<compile_context>
chip_gen: v5e
topology: v5e:2x2
jax: 0.10.0
libtpu: 0.0.40
codegen_flags: <defaults>
</compile_context>

<pallas_src>
import functools
import itertools

import jax
import jax.numpy as jnp
from jax.experimental import pallas as pl
from jax.experimental.pallas import tpu as pltpu


_VMEM_LIMIT = 48 * 1024 * 1024  # <= v7x physical 64 MiB; plenty on v5e/v6e


# ----------------------------------------------------------------------------
# helpers
# ----------------------------------------------------------------------------
def _round_up(x, m):
    return (x + m - 1) // m * m


def _m_tile(m, cap=512):
    """Row tile for the weight-stationary matmul: divides m, multiple of 8 (or full)."""
    if m % 8 != 0 or m <= 128:
        return m
    target = max(128, min(cap, m // 2))
    best = 8
    t = 8
    while t <= target:
        if m % t == 0:
            best = t
        t += 8
    return best


def _row_tile(r, bytes_per_row, budget=8 << 20):
    """Row tile for elementwise kernels: divides r, multiple of 8, fits the VMEM budget,
    and leaves >= 2 grid steps when possible (keeps both v7x TensorCores busy)."""
    if r % 8 != 0:
        return r   # irregular (small) inputs: single full block
    cap = max(8, min(budget // max(bytes_per_row, 1), 4096))
    target = min(cap, r // 2) if r >= 16 else r
    target = max(target, 8)
    best = 8
    t = 8
    while t <= target:
        if r % t == 0:
            best = t
        t += 8
    return best


def _to2d(x):
    b, h, w, c = x.shape
    return x.reshape(b * h * w, c)


# ----------------------------------------------------------------------------
# Pallas kernels
# ----------------------------------------------------------------------------
def _mm_ws_kernel(*refs, relu, has_res):
    # weight-stationary matmul + per-channel affine (+residual) (+ReLU), bf16 output
    if has_res:
        a_ref, b_ref, s_ref, t_ref, r_ref, o_ref = refs
    else:
        a_ref, b_ref, s_ref, t_ref, o_ref = refs
        r_ref = None
    y = jnp.dot(a_ref[...], b_ref[...], preferred_element_type=jnp.float32)
    y = y * s_ref[...] + t_ref[...]
    if has_res:
        y = y + r_ref[...].astype(jnp.float32)
    if relu:
        y = jnp.maximum(y, 0.0)
    o_ref[...] = y.astype(o_ref.dtype)


def _conv3x3_s1_kernel(x_ref, w_ref, s_ref, t_ref, o_ref, *, wp, m, relu):
    # x_ref: (1, Mp, Cin) bf16 flattened zero-padded image rows (Mp = Hp*Wp + 8)
    # w_ref: (9, Cin, Cout) bf16 ; out: (1, m, Cout) bf16 with m = H*Wp (garbage cols
    # at x in [W, Wp) are cropped by the caller).  Tap k is the row offset di*Wp+dj.
    acc = None
    for k in range(9):
        off = (k // 3) * wp + (k % 3)
        a = x_ref[0, off:off + m, :]
        p = jnp.dot(a, w_ref[k], preferred_element_type=jnp.float32)
        acc = p if acc is None else acc + p
    y = acc * s_ref[...] + t_ref[...]
    if relu:
        y = jnp.maximum(y, 0.0)
    o_ref[0] = y.astype(o_ref.dtype)


def _dw_fuse_kernel(x_ref, w_ref, row_ref, o_ref, *, wp, m):
    # fused:  out = org * row + depthwise3x3(org)
    # x_ref: (1, Mp, C) bf16 flat-padded org; w_ref: (9, C) f32; row_ref: (1, 1, C) f32
    acc = None
    for k in range(9):
        off = (k // 3) * wp + (k % 3)
        tap = x_ref[0, off:off + m, :].astype(jnp.float32)
        term = tap * w_ref[k:k + 1, :]
        if k == 4:                         # center tap == org itself
            term = term + tap * row_ref[0]
        acc = term if acc is None else acc + term
    o_ref[0] = acc.astype(o_ref.dtype)


def _layer_attn_kernel(x_ref, r_ref, lam_ref, s_ref, t_ref, o_ref):
    # out = x + (x + lam*res)*scale + shift   (bf16 in, f32 math, bf16 out)
    x = x_ref[...].astype(jnp.float32)
    r = r_ref[...].astype(jnp.float32)
    mr = x + lam_ref[...] * r
    o_ref[...] = (x + mr * s_ref[...] + t_ref[...]).astype(o_ref.dtype)


def _maxpool_kernel(p_ref, o_ref):
    # p_ref: (9, bm, C) bf16 taps
    acc = p_ref[0]
    for k in range(1, p_ref.shape[0]):
        acc = jnp.maximum(acc, p_ref[k])
    o_ref[...] = acc


def _gap_kernel(x_ref, o_ref):
    hw = x_ref.shape[1]
    s = jnp.sum(x_ref[0].astype(jnp.float32), axis=0, keepdims=True) * (1.0 / hw)
    o_ref[0] = s


def _dsu_kernel(x_ref, hx_ref, cx_ref,
                wi1_ref, bi1_ref, wi2_ref, bi2_ref,
                wh1_ref, bh1_ref, wh2_ref, bh2_ref,
                nh_ref, nc_ref):
    # fused DSU block: two 2-layer MLPs + LSTM-style 3-gate update (matches reference:
    # nhx = sigmoid(ncx), no output gate).
    def sig(v):
        return 1.0 / (1.0 + jnp.exp(-v))

    def mlp(v, w1, b1, w2, b2):
        h = jnp.dot(v.astype(jnp.bfloat16), w1[...],
                    preferred_element_type=jnp.float32) + b1[...]
        h = jnp.maximum(h, 0.0)
        return jnp.dot(h.astype(jnp.bfloat16), w2[...],
                       preferred_element_type=jnp.float32) + b2[...]

    gates = (mlp(x_ref[...], wi1_ref, bi1_ref, wi2_ref, bi2_ref) +
             mlp(hx_ref[...], wh1_ref, bh1_ref, wh2_ref, bh2_ref))
    c = nc_ref.shape[-1]
    i_g = sig(gates[:, 0:c])
    f_g = sig(gates[:, c:2 * c])
    c_g = jnp.tanh(gates[:, 2 * c:3 * c])
    ncx = f_g * cx_ref[...] + i_g * c_g
    nc_ref[...] = ncx
    nh_ref[...] = sig(ncx)


# ----------------------------------------------------------------------------
# Pallas wrappers (jitted so each unique shape compiles once)
# ----------------------------------------------------------------------------
@functools.partial(jax.jit, static_argnames=("relu", "out_dtype"))
def pallas_matmul_bn(a, b, scale, shift, residual=None, *, relu=False,
                     out_dtype=jnp.bfloat16):
    """out = relu?((a @ b) * scale + shift [+ residual]); bf16 MXU, f32 accum, bf16 out."""
    m, k = a.shape
    _, n = b.shape
    a = a.astype(jnp.bfloat16)
    b = b.astype(jnp.bfloat16)
    tm = _m_tile(m)
    tn = n
    if k * n * 2 > (8 << 20) and n % 256 == 0:
        tn = 256            # weight too big to stay fully resident: tile N (mult of 128)
    has_res = residual is not None

    in_specs = [pl.BlockSpec((tm, k), lambda i, j: (i, 0)),
                pl.BlockSpec((k, tn), lambda i, j: (0, j)),
                pl.BlockSpec((1, tn), lambda i, j: (0, j)),
                pl.BlockSpec((1, tn), lambda i, j: (0, j))]
    args = [a, b, scale, shift]
    if has_res:
        in_specs.append(pl.BlockSpec((tm, tn), lambda i, j: (i, j)))
        args.append(residual.astype(jnp.bfloat16))

    return pl.pallas_call(
        functools.partial(_mm_ws_kernel, relu=relu, has_res=has_res),
        out_shape=jax.ShapeDtypeStruct((m, n), out_dtype),
        grid=(m // tm, n // tn),
        in_specs=in_specs,
        out_specs=pl.BlockSpec((tm, tn), lambda i, j: (i, j)),
        compiler_params=pltpu.CompilerParams(
            dimension_semantics=("parallel", "parallel"),
            vmem_limit_bytes=_VMEM_LIMIT),
    )(*args)


@functools.partial(jax.jit, static_argnames=("h", "w", "relu"))
def pallas_conv3x3_s1(xp, w9, scale, shift, *, h, w, relu):
    """Direct 3x3 stride-1 conv + BN (+ReLU) from a flattened zero-padded image."""
    bsz, mp, cin = xp.shape
    cout = w9.shape[-1]
    wp_ = w + 2
    m = h * wp_
    kernel = functools.partial(_conv3x3_s1_kernel, wp=wp_, m=m, relu=relu)
    return pl.pallas_call(
        kernel,
        out_shape=jax.ShapeDtypeStruct((bsz, m, cout), jnp.bfloat16),
        grid=(bsz,),
        in_specs=[pl.BlockSpec((1, mp, cin), lambda i: (i, 0, 0)),
                  pl.BlockSpec((9, cin, cout), lambda i: (0, 0, 0)),
                  pl.BlockSpec((1, cout), lambda i: (0, 0)),
                  pl.BlockSpec((1, cout), lambda i: (0, 0))],
        out_specs=pl.BlockSpec((1, m, cout), lambda i: (i, 0, 0)),
        compiler_params=pltpu.CompilerParams(
            dimension_semantics=("parallel",),
            vmem_limit_bytes=_VMEM_LIMIT),
    )(xp, w9, scale, shift)


@functools.partial(jax.jit, static_argnames=("h", "w"))
def pallas_dw_scale_add(xp, w9c, rows, *, h, w):
    """Fused org*row + depthwise3x3(org) on the flattened padded org."""
    bsz, mp, c = xp.shape
    wp_ = w + 2
    m = h * wp_
    kernel = functools.partial(_dw_fuse_kernel, wp=wp_, m=m)
    return pl.pallas_call(
        kernel,
        out_shape=jax.ShapeDtypeStruct((bsz, m, c), jnp.bfloat16),
        grid=(bsz,),
        in_specs=[pl.BlockSpec((1, mp, c), lambda i: (i, 0, 0)),
                  pl.BlockSpec((9, c), lambda i: (0, 0)),
                  pl.BlockSpec((1, 1, c), lambda i: (i, 0, 0))],
        out_specs=pl.BlockSpec((1, m, c), lambda i: (i, 0, 0)),
        compiler_params=pltpu.CompilerParams(
            dimension_semantics=("parallel",),
            vmem_limit_bytes=_VMEM_LIMIT),
    )(xp, w9c, rows)


@jax.jit
def pallas_layer_attn(x2d, r2d, lam, scale, shift):
    r, c = x2d.shape
    bm = _row_tile(r, 9 * c)   # 3 bf16 streams + f32 temps per row (approx)
    return pl.pallas_call(
        _layer_attn_kernel,
        out_shape=jax.ShapeDtypeStruct((r, c), jnp.bfloat16),
        grid=(r // bm,),
        in_specs=[pl.BlockSpec((bm, c), lambda i: (i, 0)),
                  pl.BlockSpec((bm, c), lambda i: (i, 0)),
                  pl.BlockSpec((1, c), lambda i: (0, 0)),
                  pl.BlockSpec((1, c), lambda i: (0, 0)),
                  pl.BlockSpec((1, c), lambda i: (0, 0))],
        out_specs=pl.BlockSpec((bm, c), lambda i: (i, 0)),
        compiler_params=pltpu.CompilerParams(
            dimension_semantics=("parallel",),
            vmem_limit_bytes=_VMEM_LIMIT),
    )(x2d, r2d, lam, scale, shift)


@jax.jit
def pallas_maxpool_taps(taps):
    kk, r, c = taps.shape
    bm = _row_tile(r, (kk + 1) * c * 2)
    return pl.pallas_call(
        _maxpool_kernel,
        out_shape=jax.ShapeDtypeStruct((r, c), taps.dtype),
        grid=(r // bm,),
        in_specs=[pl.BlockSpec((kk, bm, c), lambda i: (0, i, 0))],
        out_specs=pl.BlockSpec((bm, c), lambda i: (i, 0)),
        compiler_params=pltpu.CompilerParams(
            dimension_semantics=("parallel",),
            vmem_limit_bytes=_VMEM_LIMIT),
    )(taps)


@jax.jit
def pallas_gap(x):  # (B, HW, C) bf16 -> (B, C) f32
    b, hw, c = x.shape
    out = pl.pallas_call(
        _gap_kernel,
        out_shape=jax.ShapeDtypeStruct((b, 1, c), jnp.float32),
        grid=(b,),
        in_specs=[pl.BlockSpec((1, hw, c), lambda i: (i, 0, 0))],
        out_specs=pl.BlockSpec((1, 1, c), lambda i: (i, 0, 0)),
        compiler_params=pltpu.CompilerParams(
            dimension_semantics=("parallel",),
            vmem_limit_bytes=_VMEM_LIMIT),
    )(x)
    return out[:, 0, :]


@jax.jit
def pallas_dsu(inp, hx, cx, ih, hh):
    """Fused DSU block (2-layer MLP on input and hidden + 3-gate update)."""
    b, c = inp.shape
    bp = _round_up(b, 8)
    x = jnp.pad(inp, ((0, bp - b), (0, 0)))
    hxb = jnp.pad(jnp.broadcast_to(hx, (b, c)), ((0, bp - b), (0, 0)))
    cxb = jnp.pad(jnp.broadcast_to(cx, (b, c)), ((0, bp - b), (0, 0)))
    args = (x, hxb, cxb,
            ih["w1"], ih["b1"], ih["w2"], ih["b2"],
            hh["w1"], hh["b1"], hh["w2"], hh["b2"])
    in_specs = [pl.BlockSpec(a.shape, lambda i: (0, 0)) for a in args]
    nh, nc = pl.pallas_call(
        _dsu_kernel,
        out_shape=(jax.ShapeDtypeStruct((bp, c), jnp.float32),
                   jax.ShapeDtypeStruct((bp, c), jnp.float32)),
        grid=(1,),
        in_specs=in_specs,
        out_specs=(pl.BlockSpec((bp, c), lambda i: (0, 0)),
                   pl.BlockSpec((bp, c), lambda i: (0, 0))),
        compiler_params=pltpu.CompilerParams(vmem_limit_bytes=_VMEM_LIMIT),
    )(*args)
    return nh[:b], nc[:b]


# ----------------------------------------------------------------------------
# JAX glue: padding / tap extraction, conv / pool / module application
# ----------------------------------------------------------------------------
def _flat_pad(x):
    """Zero-pad NHWC by 1 and flatten spatial to (B, Hp*Wp + 8, C) bf16 rows."""
    b, h, w, c = x.shape
    xp = jnp.pad(x.astype(jnp.bfloat16), ((0, 0), (1, 1), (1, 1), (0, 0)))
    xp = xp.reshape(b, (h + 2) * (w + 2), c)
    return jnp.pad(xp, ((0, 0), (0, 8), (0, 0)))      # safety rows for the last taps


def extract_taps(x, kh, kw, stride, pad, pad_value=0.0):
    b, h, w, c = x.shape
    xp = jnp.pad(x, ((0, 0), (pad, pad), (pad, pad), (0, 0)),
                 constant_values=pad_value)
    ho = (h + 2 * pad - kh) // stride + 1
    wo = (w + 2 * pad - kw) // stride + 1
    taps = [xp[:, di:di + stride * (ho - 1) + 1:stride,
               dj:dj + stride * (wo - 1) + 1:stride, :]
            for di in range(kh) for dj in range(kw)]
    return taps, ho, wo


def conv_bn(x, w, bnp, kh, kw, stride=1, pad=0, relu=True, residual=None,
            out_dtype=jnp.bfloat16):
    """conv (as matmul) fused with BN affine (+residual) (+ReLU); bf16 activations."""
    b, h, wd, cin = x.shape
    xb = x.astype(jnp.bfloat16)
    if kh == 1 and kw == 1 and pad == 0:
        xs = xb if stride == 1 else xb[:, ::stride, ::stride, :]
        ho, wo = xs.shape[1], xs.shape[2]
        a2d = xs.reshape(b * ho * wo, cin)
    elif kh == 3 and kw == 3 and stride == 1 and pad == 1:
        # direct 3x3 conv via shifted-slab matmuls (no im2col HBM round trip)
        cout = w.shape[-1]
        xp = _flat_pad(xb)
        y = pallas_conv3x3_s1(xp, w.reshape(9, cin, cout),
                              bnp["scale"], bnp["shift"], h=h, w=wd, relu=relu)
        return y.reshape(b, h, wd + 2, cout)[:, :, :wd, :]
    else:
        # TODO(synk): strided windows (7x7 stem, stride-2 3x3) stay on the bf16 im2col path.
        taps, ho, wo = extract_taps(xb, kh, kw, stride, pad)
        a2d = jnp.stack(taps, axis=3).reshape(b * ho * wo, kh * kw * cin)
    res2d = None if residual is None else _to2d(residual).astype(jnp.bfloat16)
    y = pallas_matmul_bn(a2d, w, bnp["scale"], bnp["shift"], res2d,
                         relu=relu, out_dtype=out_dtype)
    return y.reshape(b, ho, wo, -1)


def maxpool_3x3_s2(x):
    b, h, w, c = x.shape
    neg = float(jnp.finfo(jnp.bfloat16).min)
    taps, ho, wo = extract_taps(x.astype(jnp.bfloat16), 3, 3, 2, 1, pad_value=neg)
    stacked = jnp.stack(taps, axis=0).reshape(9, b * ho * wo, c)
    y = pallas_maxpool_taps(stacked)
    return y.reshape(b, ho, wo, c)


def global_avg_pool(x):
    b, h, w, c = x.shape
    return pallas_gap(x.reshape(b, h * w, c))


def bottleneck_apply(p, x):
    identity = x
    out = conv_bn(x, p["conv1_w"], p["bn1"], 1, 1, 1, 0, relu=True)
    out = conv_bn(out, p["conv2_w"], p["bn2"], 3, 3, p["stride"], 1, relu=True)
    if "down_w" in p:
        identity = conv_bn(x, p["down_w"], p["down_bn"], 1, 1, p["stride"], 0,
                           relu=False)
    # conv3 + bn3 + residual add + ReLU fused into one matmul epilogue
    out = conv_bn(out, p["conv3_w"], p["bn3"], 1, 1, 1, 0, relu=True,
                  residual=identity)
    return out, identity


def dw_scale_add(org, out_h, w9c):
    # org * out_h + extict(org): shifted-slab depthwise conv fused with the scaling row
    b, h, w, c = org.shape
    xp = _flat_pad(org)
    rows = out_h.reshape(b, 1, c).astype(jnp.float32)
    y = pallas_dw_scale_add(xp, w9c, rows, h=h, w=w)
    return y.reshape(b, h, w + 2, c)[:, :, :w, :]


def layer_attention_apply(p, x, org):
    b, h, w, c = x.shape
    # TODO(synk): `light_layer_attention` (mrla) is not defined in the reference source;
    # attn_t is treated as identity(x) (pass-through).
    out = pallas_layer_attn(_to2d(x), _to2d(org), p["lam"],
                            p["bn"]["scale"], p["bn"]["shift"])
    return out.reshape(b, h, w, c)


def attention_stage_apply(sp, x):
    bsz = x.shape[0]
    c = sp["C"]
    ht = ct = None
    for idx, (bp, ap) in enumerate(zip(sp["blocks"], sp["attn"])):
        x, org = bottleneck_apply(bp, x)
        seq = global_avg_pool(x)                               # (B, C) f32
        if idx == 0:
            hx = jnp.zeros((bsz, c), jnp.float32)
            cx = jnp.zeros((bsz, c), jnp.float32)
        else:
            hx, cx = ht[0], ct[0]
        nhx, ncx = pallas_dsu(seq, hx, cx, sp["lstm"]["ih"], sp["lstm"]["hh"])
        ht, ct = nhx[None], ncx[None]                          # (1, B, C)
        h_in, c_in = ht[-1], ct[-1]                            # (B, C)
        y_in = global_avg_pool(org)                            # (B, C)
        # mirrors the reference: hidden[0][0] uses sample-0 state broadcast over batch
        out_h, _ = pallas_dsu(y_in, h_in[0:1], c_in[0:1],
                              sp["lstm"]["ih"], sp["lstm"]["hh"])
        org = dw_scale_add(org, out_h, sp["extict_w"])
        x = layer_attention_apply(ap, x, org)
    return x


def resnet_forward(params, x_nchw):
    x = jnp.transpose(x_nchw, (0, 2, 3, 1)).astype(jnp.bfloat16)   # NCHW -> NHWC
    x = conv_bn(x, params["conv1_w"], params["bn1"], 7, 7, 2, 3, relu=True)
    x = maxpool_3x3_s2(x)
    for sp in params["stages"]:
        x = attention_stage_apply(sp, x)
    feat = global_avg_pool(x)                                      # (B, 2048) f32
    logits = pallas_matmul_bn(feat.astype(jnp.bfloat16), params["fc_w"],
                              params["fc_scale"], params["fc_b"],
                              relu=False, out_dtype=jnp.float32)
    return logits


# ----------------------------------------------------------------------------
# Deterministic synthetic parameter construction (Bottleneck, layers=(1,1,1,1))
# ----------------------------------------------------------------------------
def make_params(key, layers=(1, 1, 1, 1), num_classes=10):
    counter = itertools.count()

    def nk():
        return jax.random.fold_in(key, next(counter))

    def conv_w(kh, kw, cin, cout):
        std = (2.0 / (kh * kw * cout)) ** 0.5
        w = jax.random.normal(nk(), (kh, kw, cin, cout), jnp.float32) * std
        return w.reshape(kh * kw * cin, cout).astype(jnp.bfloat16)

    def dw_w(c):
        std = (2.0 / 9.0) ** 0.5
        return jax.random.normal(nk(), (9, c), jnp.float32) * std

    def linear(cin, cout):
        std = (1.0 / cin) ** 0.5
        w = jax.random.normal(nk(), (cin, cout), jnp.float32) * std
        bias = jax.random.normal(nk(), (1, cout), jnp.float32) * std
        return w.astype(jnp.bfloat16), bias

    def bn(c, zero=False):
        gamma = jnp.zeros((c,), jnp.float32) if zero else jnp.ones((c,), jnp.float32)
        beta = jnp.zeros((c,), jnp.float32)
        mean = jnp.zeros((c,), jnp.float32)
        var = jnp.ones((c,), jnp.float32)
        scale = gamma / jnp.sqrt(var + 1e-5)
        shift = beta - mean * scale
        return dict(scale=scale.reshape(1, c), shift=shift.reshape(1, c))

    params = dict(conv1_w=conv_w(7, 7, 3, 64), bn1=bn(64))
    inplanes = 64
    stages = []
    for si, (planes, nblocks) in enumerate(zip((64, 128, 256, 512), layers)):
        stage_stride = 1 if si == 0 else 2
        c = planes * 4
        blocks, attns = [], []
        for bi in range(nblocks):
            s = stage_stride if bi == 0 else 1
            width = planes
            bp = dict(stride=s,
                      conv1_w=conv_w(1, 1, inplanes, width), bn1=bn(width),
                      conv2_w=conv_w(3, 3, width, width), bn2=bn(width),
                      conv3_w=conv_w(1, 1, width, c), bn3=bn(c, zero=True))
            if bi == 0 and (s != 1 or inplanes != c):
                bp["down_w"] = conv_w(1, 1, inplanes, c)
                bp["down_bn"] = bn(c)
            inplanes = c
            blocks.append(bp)
            attns.append(dict(lam=jax.random.normal(nk(), (1, c), jnp.float32),
                              bn=bn(c)))
        hid = c // 16

        def cell():
            w1, b1 = linear(c, hid)
            w2, b2 = linear(hid, 3 * c)
            return dict(w1=w1, b1=b1, w2=w2, b2=b2)

        lstm = dict(ih=cell(), hh=cell())
        stages.append(dict(C=c, blocks=blocks, attn=attns, lstm=lstm,
                           extict_w=dw_w(c)))
    params["stages"] = stages
    fw, fb = linear(512 * 4, num_classes)
    params["fc_w"] = fw
    params["fc_b"] = fb
    params["fc_scale"] = jnp.ones((1, num_classes), jnp.float32)
    return params


if __name__ == "__main__":
    root = jax.random.PRNGKey(0)
    params = make_params(jax.random.fold_in(root, 1),
                         layers=(1, 1, 1, 1), num_classes=10)
    x = jax.random.normal(jax.random.fold_in(root, 2), (2, 3, 64, 64), jnp.float32)
    logits = resnet_forward(params, x)
    logits = jax.block_until_ready(logits)
    assert logits.shape == (2, 10)
    assert bool(jnp.all(jnp.isfinite(logits)))
    print("KERNEL_OK")
</pallas_src>

<mosaic_0001>
module attributes {stable_mosaic.version = 11 : i64} {
  func.func @_mm_ws_kernel(%arg0: i32, %arg1: i32, %arg2: memref<512x147xbf16, #tpu.memory_space<vmem>>, %arg3: memref<147x64xbf16, #tpu.memory_space<vmem>>, %arg4: memref<1x64xf32, #tpu.memory_space<vmem>>, %arg5: memref<1x64xf32, #tpu.memory_space<vmem>>, %arg6: memref<512x64xbf16, #tpu.memory_space<vmem>>) attributes {dimension_semantics = [#tpu.dimension_semantics<parallel>, #tpu.dimension_semantics<parallel>], iteration_bounds = array<i64: 4, 1>, scalar_prefetch = 0 : i64, scratch_operands = 0 : i64, tpu.core_type = #tpu.core_type<tc>, window_params = [{transform_indices = @transform_0, window_bounds = array<i64: 512, 147>}, {transform_indices = @transform_1, window_bounds = array<i64: 147, 64>}, {transform_indices = @transform_2, window_bounds = array<i64: 1, 64>}, {transform_indices = @transform_3, window_bounds = array<i64: 1, 64>}, {transform_indices = @transform_4, window_bounds = array<i64: 512, 64>}]} {
    %c0 = arith.constant 0 : index
    %c0_0 = arith.constant 0 : index
    %0 = vector.load %arg2[%c0, %c0_0] : memref<512x147xbf16, #tpu.memory_space<vmem>>, vector<512x147xbf16>
    %c0_1 = arith.constant 0 : index
    %c0_2 = arith.constant 0 : index
    %1 = vector.load %arg3[%c0_1, %c0_2] : memref<147x64xbf16, #tpu.memory_space<vmem>>, vector<147x64xbf16>
    %cst = arith.constant dense<0.000000e+00> : vector<512x64xf32>
    %2 = tpu.matmul %0, %1, %cst {dimension_numbers = #tpu.dot_dimension_numbers<[1], [0], [0], [1], [0, 0, 1, 1], [], []>} : vector<512x147xbf16>, vector<147x64xbf16>, vector<512x64xf32> -> vector<512x64xf32>
    %c0_3 = arith.constant 0 : index
    %c0_4 = arith.constant 0 : index
    %3 = vector.load %arg4[%c0_3, %c0_4] : memref<1x64xf32, #tpu.memory_space<vmem>>, vector<1x64xf32>
    %4 = vector.broadcast %3 : vector<1x64xf32> to vector<512x64xf32>
    %5 = arith.mulf %2, %4 : vector<512x64xf32>
    %c0_5 = arith.constant 0 : index
    %c0_6 = arith.constant 0 : index
    %6 = vector.load %arg5[%c0_5, %c0_6] : memref<1x64xf32, #tpu.memory_space<vmem>>, vector<1x64xf32>
    %7 = vector.broadcast %6 : vector<1x64xf32> to vector<512x64xf32>
    %8 = arith.addf %5, %7 : vector<512x64xf32>
    %cst_7 = arith.constant 0.000000e+00 : f32
    %9 = vector.broadcast %cst_7 : f32 to vector<512x64xf32>
    %10 = arith.maximumf %8, %9 : vector<512x64xf32>
    %11 = arith.truncf %10 : vector<512x64xf32> to vector<512x64xbf16>
    %c0_8 = arith.constant 0 : index
    %c0_9 = arith.constant 0 : index
    %12 = vector.load %arg6[%c0_8, %c0_9] : memref<512x64xbf16, #tpu.memory_space<vmem>>, vector<512x64xbf16>
    tpu.vector_store %arg6[%c0_8, %c0_9], %11 {strides = array<i32>} : memref<512x64xbf16, #tpu.memory_space<vmem>>, vector<512x64xbf16>,
    return
  }
  func.func @transform_0(%arg0: i32, %arg1: i32) -> (i32, i32) {
    %c0_i32 = arith.constant 0 : i32
    %c0_i32_0 = arith.constant 0 : i32
    return %arg0, %c0_i32 : i32, i32
  }
  func.func @transform_1(%arg0: i32, %arg1: i32) -> (i32, i32) {
    %c0_i32 = arith.constant 0 : i32
    %c0_i32_0 = arith.constant 0 : i32
    return %c0_i32, %arg1 : i32, i32
  }
  func.func @transform_2(%arg0: i32, %arg1: i32) -> (i32, i32) {
    %c0_i32 = arith.constant 0 : i32
    %c0_i32_0 = arith.constant 0 : i32
    return %c0_i32, %arg1 : i32, i32
  }
  func.func @transform_3(%arg0: i32, %arg1: i32) -> (i32, i32) {
    %c0_i32 = arith.constant 0 : i32
    %c0_i32_0 = arith.constant 0 : i32
    return %c0_i32, %arg1 : i32, i32
  }
  func.func @transform_4(%arg0: i32, %arg1: i32) -> (i32, i32) {
    %c0_i32 = arith.constant 0 : i32
    return %arg0, %arg1 : i32, i32
  }
}

</mosaic_0001>

<llo_original>
// kernel: pallas_matmul_bn.1
$region0: #{pallas_matmul_bn.1}
  #allocation0 [shape = 'u32[]', space=smem, size = 0x4, offset = 0x4, fixed_abs, tag = 'smem constant byte address 0x4 - core index']
  #allocation1 [shape = 'u32[72,128]{1,0:T(1,128)}', space=vmem, size = 0x9000, scoped, tag = 'internal scratch']
  %s0 = inlined_call_operand.vmem [shape: bf16[2048,147], index: 0, kind: input, shape index: {}]
  %s1 = inlined_call_operand.vmem [shape: bf16[147,64], index: 1, kind: input, shape index: {}]
  %s2 = inlined_call_operand.vmem [shape: f32[1,64], index: 2, kind: input, shape index: {}]
  %s3 = inlined_call_operand.vmem [shape: f32[1,64], index: 3, kind: input, shape index: {}]
  %s4 = inlined_call_operand.vmem [shape: bf16[2048,64], index: 4, kind: output, shape index: {}]
  %s5 = sld [smem:[#allocation0]]
  $region49: #{pallas_matmul_bn.1} parent=0
    _
  %s7 = ssub.s32 1, %s5
  %s8 = scalar_select 0, %s7, %s5
  loop: start=0, step=1, limit=6
  $region2: #{pallas_matmul_bn.1} parent=0 // loop_pre_header
    _
  $region3: #{pallas_matmul_bn.1} parent=0 // loop_header
    %s10 = sphi 0, %s14
    %p11 = scmp.ge.s32.totalorder %s10, 6
    %s17 = sphi 0, %s29
    %s18 = sphi 0, %s25
    %s19 = sphi 0, %s17
    %s20 = sphi 0, %s18
    %s21 = sphi 0, %s19
    %s22 = sphi 0, %s20
    %s32 = sphi 0, %s34
    %s35 = sphi 0, %s32
    %s36 = sphi 0, %s35
    %s52 = sphi 0, %s36
    %s58 = sphi 0, %s60
    %s61 = sphi 0, %s58
    %s62 = sphi 0, %s61
    %s78 = sphi 0, %s62
    %s84 = sphi 0, %s86
    %s87 = sphi 0, %s84
    %s88 = sphi 0, %s87
    %s104 = sphi 0, %s88
    %s110 = sphi 0, %s112
    %s113 = sphi 0, %s110
    %s114 = sphi 0, %s113
    %s130 = sphi 0, %s114
    %s138 = sphi 0, %s140
    %s141 = sphi 0, %s138
    %s142 = sphi 0, %s141
    %s158 = sphi 0, %s142
  $region4: #{pallas_matmul_bn.1} parent=0 // loop_header_branch
    %13 = sbr.rel (%p11) target = $region8
  $region5: #{pallas_matmul_bn.1} parent=0 // loop_body
    %s15 = ssub.s32 %s10, 1
    %s16 = ssub.s32 %s10, 2
    %s23 = sadd.s32 1, %s18
    %p24 = scmp.ge.s32.totalorder %s23, 1
    %s25 = scalar_select %p24, 0, %s23
    %s26 = sadd.s32 1, %s17
    %s27 = scalar_select %p24, %s26, %s17
    %p28 = scmp.ge.s32.totalorder %s27, 4
    %s29 = scalar_select %p28, 0, %s27
    %s30 = ssub.s32 %s17, %s29
    %p31 = scmp.eq.s32.totalorder %s30, 0
    %s33 = sadd.s32 %s32, 1
    %s34 = scalar_select %p31, %s32, %s33
    %p37 = pneg %p31
    %p38 = scmp.eq.s32.totalorder %s10, 3
    %p39 = por %p37, %p38
    %p40 = scmp.ne.s32.totalorder %s32, %s35
    %p41 = scmp.eq.s32.totalorder %s10, 0
    %p42 = por %p40, %p41
    %p43 = scmp.ne.s32.totalorder %s32, %s35
    %p44 = scmp.eq.s32.totalorder %s15, 3
    %p45 = por %p43, %p44
    %p46 = scmp.ne.s32.totalorder %s35, %s36
    %p47 = scmp.eq.s32.totalorder %s15, 0
    %p48 = por %p46, %p47
    %p49 = scmp.ne.s32.totalorder %s35, %s36
    %p50 = scmp.eq.s32.totalorder %s16, 3
    %p51 = por %p49, %p50
    %p53 = scmp.ne.s32.totalorder %s36, %s52
    %p54 = scmp.eq.s32.totalorder %s16, 0
    %p55 = por %p53, %p54
    %s56 = ssub.s32 %s18, %s25
    %p57 = scmp.eq.s32.totalorder %s56, 0
    %s59 = sadd.s32 %s58, 1
    %s60 = scalar_select %p57, %s58, %s59
    %p63 = pneg %p57
    %p64 = scmp.eq.s32.totalorder %s10, 3
    %p65 = por %p63, %p64
    %p66 = scmp.ne.s32.totalorder %s58, %s61
    %p67 = scmp.eq.s32.totalorder %s10, 0
    %p68 = por %p66, %p67
    %p69 = scmp.ne.s32.totalorder %s58, %s61
    %p70 = scmp.eq.s32.totalorder %s15, 3
    %p71 = por %p69, %p70
    %p72 = scmp.ne.s32.totalorder %s61, %s62
    %p73 = scmp.eq.s32.totalorder %s15, 0
    %p74 = por %p72, %p73
    %p75 = scmp.ne.s32.totalorder %s61, %s62
    %p76 = scmp.eq.s32.totalorder %s16, 3
    %p77 = por %p75, %p76
    %p79 = scmp.ne.s32.totalorder %s62, %s78
    %p80 = scmp.eq.s32.totalorder %s16, 0
    %p81 = por %p79, %p80
    %s82 = ssub.s32 %s18, %s25
    %p83 = scmp.eq.s32.totalorder %s82, 0
    %s85 = sadd.s32 %s84, 1
    %s86 = scalar_select %p83, %s84, %s85
    %p89 = pneg %p83
    %p90 = scmp.eq.s32.totalorder %s10, 3
    %p91 = por %p89, %p90
    %p92 = scmp.ne.s32.totalorder %s84, %s87
    %p93 = scmp.eq.s32.totalorder %s10, 0
    %p94 = por %p92, %p93
    %p95 = scmp.ne.s32.totalorder %s84, %s87
    %p96 = scmp.eq.s32.totalorder %s15, 3
    %p97 = por %p95, %p96
    %p98 = scmp.ne.s32.totalorder %s87, %s88
    %p99 = scmp.eq.s32.totalorder %s15, 0
    %p100 = por %p98, %p99
    %p101 = scmp.ne.s32.totalorder %s87, %s88
    %p102 = scmp.eq.s32.totalorder %s16, 3
    %p103 = por %p101, %p102
    %p105 = scmp.ne.s32.totalorder %s88, %s104
    %p106 = scmp.eq.s32.totalorder %s16, 0
    %p107 = por %p105, %p106
    %s108 = ssub.s32 %s18, %s25
    %p109 = scmp.eq.s32.totalorder %s108, 0
    %s111 = sadd.s32 %s110, 1
    %s112 = scalar_select %p109, %s110, %s111
    %p115 = pneg %p109
    %p116 = scmp.eq.s32.totalorder %s10, 3
    %p117 = por %p115, %p116
    %p118 = scmp.ne.s32.totalorder %s110, %s113
    %p119 = scmp.eq.s32.totalorder %s10, 0
    %p120 = por %p118, %p119
    %p121 = scmp.ne.s32.totalorder %s110, %s113
    %p122 = scmp.eq.s32.totalorder %s15, 3
    %p123 = por %p121, %p122
    %p124 = scmp.ne.s32.totalorder %s113, %s114
    %p125 = scmp.eq.s32.totalorder %s15, 0
    %p126 = por %p124, %p125
    %p127 = scmp.ne.s32.totalorder %s113, %s114
    %p128 = scmp.eq.s32.totalorder %s16, 3
    %p129 = por %p127, %p128
    %p131 = scmp.ne.s32.totalorder %s114, %s130
    %p132 = scmp.eq.s32.totalorder %s16, 0
    %p133 = por %p131, %p132
    %s134 = ssub.s32 %s17, %s29
    %s135 = ssub.s32 %s18, %s25
    %s136 = sor.u32 %s134, %s135
    %p137 = scmp.eq.s32.totalorder %s136, 0
    %s139 = sadd.s32 %s138, 1
    %s140 = scalar_select %p137, %s138, %s139
    %p143 = pneg %p137
    %p144 = scmp.eq.s32.totalorder %s10, 3
    %p145 = por %p143, %p144
    %p146 = scmp.ne.s32.totalorder %s138, %s141
    %p147 = scmp.eq.s32.totalorder %s10, 0
    %p148 = por %p146, %p147
    %p149 = scmp.ne.s32.totalorder %s138, %s141
    %p150 = scmp.eq.s32.totalorder %s15, 3
    %p151 = por %p149, %p150
    %p152 = scmp.ne.s32.totalorder %s141, %s142
    %p153 = scmp.eq.s32.totalorder %s15, 0
    %p154 = por %p152, %p153
    %p155 = scmp.ne.s32.totalorder %s141, %s142
    %p156 = scmp.eq.s32.totalorder %s16, 3
    %p157 = por %p155, %p156
    %p159 = scmp.ne.s32.totalorder %s142, %s158
    %p160 = scmp.eq.s32.totalorder %s16, 0
    %p161 = por %p159, %p160
    %p162 = scmp.le.s32.totalorder 1, %s10
    %p163 = scmp.lt.s32.totalorder %s10, 5
    %p164 = pnand %p162, %p163
    %p165 = pneg %p164
    // Predicated region
    $region9: #{pallas_matmul_bn.1} parent=5 // pred_check
      _
    $region10: #{pallas_matmul_bn.1} parent=5 // pred_check_branch
      %167 = sbr.rel (%p164) target = $region12
    $region11: #{pallas_matmul_bn.1} parent=5 // pred_region
      %s168 = ssub.s32 %s10, 1
      // Predicated region
      $region13: #{pallas_matmul_bn.1} parent=11 // pred_check
        %p169 = pneg %p74
      $region14: #{pallas_matmul_bn.1} parent=11 // pred_check_branch
        %171 = sbr.rel (%p169) target = $region16
      $region15: #{pallas_matmul_bn.1} parent=11 // pred_region
        %p172 = scmp.lt.s32.totalorder %s20, 0
        %s173 = scalar_select %p172, %s20, 0
        %s174 = smul.addr %s173, 4
        %s175 = scalar_lea.vmem %s1, %s174
      $region16: #{pallas_matmul_bn.1} parent=11 // pred_fallthru
        _
      // Predicated region
      $region17: #{pallas_matmul_bn.1} parent=11 // pred_check
        %p176 = pneg %p100
      $region18: #{pallas_matmul_bn.1} parent=11 // pred_check_branch
        %178 = sbr.rel (%p176) target = $region20
      $region19: #{pallas_matmul_bn.1} parent=11 // pred_region
        %p179 = scmp.lt.s32.totalorder %s20, 0
        %s180 = scalar_select %p179, %s20, 0
        %s181 = scalar_lea.vmem %s2, %s180
      $region20: #{pallas_matmul_bn.1} parent=11 // pred_fallthru
        _
      // Predicated region
      $region21: #{pallas_matmul_bn.1} parent=11 // pred_check
        %p182 = pneg %p126
      $region22: #{pallas_matmul_bn.1} parent=11 // pred_check_branch
        %184 = sbr.rel (%p182) target = $region24
      $region23: #{pallas_matmul_bn.1} parent=11 // pred_region
        %p185 = scmp.lt.s32.totalorder %s20, 0
        %s186 = scalar_select %p185, %s20, 0
        %s187 = scalar_lea.vmem %s3, %s186
      $region24: #{pallas_matmul_bn.1} parent=11 // pred_fallthru
        _
    $region12: #{pallas_matmul_bn.1} parent=5 // pred_fallthru
      _
    %p188 = scmp.lt.s32.totalorder %s10, 4
    // Predicated region
    $region25: #{pallas_matmul_bn.1} parent=5 // pred_check
      %p189 = pneg %p188
    $region26: #{pallas_matmul_bn.1} parent=5 // pred_check_branch
      %191 = sbr.rel (%p189) target = $region28
    $region27: #{pallas_matmul_bn.1} parent=5 // pred_region
      // Predicated region
      $region29: #{pallas_matmul_bn.1} parent=27 // pred_check
        %p192 = pneg %p42
      $region30: #{pallas_matmul_bn.1} parent=27 // pred_check_branch
        %194 = sbr.rel (%p192) target = $region32
      $region31: #{pallas_matmul_bn.1} parent=27 // pred_region
        %s195 = smul.u32 64, %s17
        %p196 = scmp.lt.s32.totalorder %s195, 255
        %s197 = scalar_select %p196, %s195, 255
        %s198 = smul.addr %s197, 2
        %s199 = smul.addr %s198, 4
        %s200 = scalar_lea.vmem %s0, %s199
        %s201 = smul.u32 64, %s17
      $region32: #{pallas_matmul_bn.1} parent=27 // pred_fallthru
        _
    $region28: #{pallas_matmul_bn.1} parent=5 // pred_fallthru
      _
    %p202 = scmp.le.s32.totalorder 1, %s10
    %p203 = scmp.lt.s32.totalorder %s10, 5
    %p204 = pnand %p202, %p203
    %p205 = pneg %p204
    // Predicated region
    $region33: #{pallas_matmul_bn.1} parent=5 // pred_check
      _
    $region34: #{pallas_matmul_bn.1} parent=5 // pred_check_branch
      %207 = sbr.rel (%p204) target = $region36
    $region35: #{pallas_matmul_bn.1} parent=5 // pred_region
      %s208 = ssub.s32 %s10, 1
      %s209 = smul.u32 64, %s19
      %p210 = scmp.lt.s32.totalorder %s209, 255
      %s211 = scalar_select %p210, %s209, 255
      %s212 = smul.addr %s211, 2
      %s213 = smul.addr %s212, 4
      %s214 = scalar_lea.vmem %s0, %s213
      %p215 = pneg %p48
      %p216 = pneg %p45
      %p217 = scmp.lt.s32.totalorder %s20, 0
      %s218 = scalar_select %p217, %s20, 0
      %s219 = smul.addr %s218, 4
      %s220 = scalar_lea.vmem %s1, %s219
      %p221 = pneg %p74
      %p222 = pneg %p71
      %p223 = scmp.lt.s32.totalorder %s20, 0
      %s224 = scalar_select %p223, %s20, 0
      %s225 = scalar_lea.vmem %s2, %s224
      %p226 = pneg %p100
      %p227 = pneg %p97
      %p228 = scmp.lt.s32.totalorder %s20, 0
      %s229 = scalar_select %p228, %s20, 0
      %s230 = scalar_lea.vmem %s3, %s229
      %p231 = pneg %p126
      %p232 = pneg %p123
      %p233 = pneg %p154
      %p234 = pneg %p151
      %s235 = smul.u32 64, %s19
      %p236 = scmp.lt.s32.totalorder %s235, 255
      %s237 = scalar_select %p236, %s235, 255
      %p238 = scmp.lt.s32.totalorder %s20, 0
      %s239 = scalar_select %p238, %s20, 0
      %s240 = sadd.s32 %s239, %s237
      %s241 = smul.addr %s240, 4
      %s242 = scalar_lea.vmem %s4, %s241
      %s243 = smul.u32 64, %s19
      %p244 = scmp.lt.s32.totalorder %s243, 255
      %s245 = scalar_select %p244, %s243, 255
      %s246 = smul.addr %s245, 2
      %s247 = smul.addr %s246, 4
      %s248 = scalar_lea.vmem %s0, %s247
      %s249 = smul.u32 64, %s19
      %p250 = scmp.lt.s32.totalorder %s20, 0
      %s251 = scalar_select %p250, %s20, 0
      %s252 = smul.addr %s251, 4
      %s253 = scalar_lea.vmem %s1, %s252
      %p254 = scmp.lt.s32.totalorder %s20, 0
      %s255 = scalar_select %p254, %s20, 0
      %s256 = scalar_lea.vmem %s2, %s255
      %p257 = scmp.lt.s32.totalorder %s20, 0
      %s258 = scalar_select %p257, %s20, 0
      %s259 = scalar_lea.vmem %s3, %s258
      %s260 = smul.u32 64, %s19
      %p261 = scmp.lt.s32.totalorder %s260, 255
      %s262 = scalar_select %p261, %s260, 255
      %p263 = scmp.lt.s32.totalorder %s20, 0
      %s264 = scalar_select %p263, %s20, 0
      %s265 = sadd.s32 %s264, %s262
      %s266 = smul.addr %s265, 4
      %s267 = scalar_lea.vmem %s4, %s266
      %s268 = smul.u32 64, %s19
      %v270 = vld [vmem:[%s248] sm:$0xff]
      %v271 = vld [vmem:[%s248 + $0x8] sm:$0xff]
      %v272 = vld [vmem:[%s248 + $0x10] sm:$0xff]
      %v273 = vld [vmem:[%s248 + $0x18] sm:$0xff]
      %v274 = vld [vmem:[%s248 + $0x20] sm:$0xff]
      %v275 = vld [vmem:[%s248 + $0x28] sm:$0xff]
      %v276 = vld [vmem:[%s248 + $0x30] sm:$0xff]
      %v277 = vld [vmem:[%s248 + $0x38] sm:$0xff]
      %v278 = vld [vmem:[%s248 + $0x40] sm:$0xff]
      %v279 = vld [vmem:[%s248 + $0x48] sm:$0xff]
      %v280 = vld [vmem:[%s248 + $0x50] sm:$0xff]
      %v281 = vld [vmem:[%s248 + $0x58] sm:$0xff]
      %v282 = vld [vmem:[%s248 + $0x60] sm:$0xff]
      %v283 = vld [vmem:[%s248 + $0x68] sm:$0xff]
      %v284 = vld [vmem:[%s248 + $0x70] sm:$0xff]
      %v285 = vld [vmem:[%s248 + $0x78] sm:$0xff]
      %v286 = vld [vmem:[%s248 + $0x80] sm:$0xff]
      %v287 = vld [vmem:[%s248 + $0x88] sm:$0xff]
      %v288 = vld [vmem:[%s248 + $0x90] sm:$0xff]
      %v289 = vld [vmem:[%s248 + $0x98] sm:$0xff]
      %v290 = vld [vmem:[%s248 + $0xa0] sm:$0xff]
      %v291 = vld [vmem:[%s248 + $0xa8] sm:$0xff]
      %v292 = vld [vmem:[%s248 + $0xb0] sm:$0xff]
      %v293 = vld [vmem:[%s248 + $0xb8] sm:$0xff]
      %v294 = vld [vmem:[%s248 + $0xc0] sm:$0xff]
      %v295 = vld [vmem:[%s248 + $0xc8] sm:$0xff]
      %v296 = vld [vmem:[%s248 + $0xd0] sm:$0xff]
      %v297 = vld [vmem:[%s248 + $0xd8] sm:$0xff]
      %v298 = vld [vmem:[%s248 + $0xe0] sm:$0xff]
      %v299 = vld [vmem:[%s248 + $0xe8] sm:$0xff]
      %v300 = vld [vmem:[%s248 + $0xf0] sm:$0xff]
      %v301 = vld [vmem:[%s248 + $0xf8] sm:$0xff]
      %v302 = vld [vmem:[%s248 + $0x100] sm:$0xff]
      %v303 = vld [vmem:[%s248 + $0x108] sm:$0xff]
      %v304 = vld [vmem:[%s248 + $0x110] sm:$0xff]
      %v305 = vld [vmem:[%s248 + $0x118] sm:$0xff]
      %v306 = vld [vmem:[%s248 + $0x120] sm:$0xff]
      %v307 = vld [vmem:[%s248 + $0x128] sm:$0xff]
      %v308 = vld [vmem:[%s248 + $0x130] sm:$0xff]
      %v309 = vld [vmem:[%s248 + $0x138] sm:$0xff]
      %v310 = vld [vmem:[%s248 + $0x140] sm:$0xff]
      %v311 = vld [vmem:[%s248 + $0x148] sm:$0xff]
      %v312 = vld [vmem:[%s248 + $0x150] sm:$0xff]
      %v313 = vld [vmem:[%s248 + $0x158] sm:$0xff]
      %v314 = vld [vmem:[%s248 + $0x160] sm:$0xff]
      %v315 = vld [vmem:[%s248 + $0x168] sm:$0xff]
      %v316 = vld [vmem:[%s248 + $0x170] sm:$0xff]
      %v317 = vld [vmem:[%s248 + $0x178] sm:$0xff]
      %v318 = vld [vmem:[%s248 + $0x180] sm:$0xff]
      %v319 = vld [vmem:[%s248 + $0x188] sm:$0xff]
      %v320 = vld [vmem:[%s248 + $0x190] sm:$0xff]
      %v321 = vld [vmem:[%s248 + $0x198] sm:$0xff]
      %v322 = vld [vmem:[%s248 + $0x1a0] sm:$0xff]
      %v323 = vld [vmem:[%s248 + $0x1a8] sm:$0xff]
      %v324 = vld [vmem:[%s248 + $0x1b0] sm:$0xff]
      %v325 = vld [vmem:[%s248 + $0x1b8] sm:$0xff]
      %v326 = vld [vmem:[%s248 + $0x1c0] sm:$0xff]
      %v327 = vld [vmem:[%s248 + $0x1c8] sm:$0xff]
      %v328 = vld [vmem:[%s248 + $0x1d0] sm:$0xff]
      %v329 = vld [vmem:[%s248 + $0x1d8] sm:$0xff]
      %v330 = vld [vmem:[%s248 + $0x1e0] sm:$0xff]
      %v331 = vld [vmem:[%s248 + $0x1e8] sm:$0xff]
      %v332 = vld [vmem:[%s248 + $0x1f0] sm:$0xff]
      %v333 = vld [vmem:[%s248 + $0x1f8] sm:$0xff]
      %v334 = vld [vmem:[%s253] sm:$0xf]
      %v335 = vld [vmem:[%s253 + $0x4] sm:$0xf]
      %v336 = vld [vmem:[%s253 + $0x8] sm:$0xf]
      %v337 = vld [vmem:[%s253 + $0xc] sm:$0xf]
      %v338 = vld [vmem:[%s253 + $0x10] sm:$0xf]
      %v339 = vld [vmem:[%s253 + $0x14] sm:$0xf]
      %v340 = vld [vmem:[%s253 + $0x18] sm:$0xf]
      %v341 = vld [vmem:[%s253 + $0x1c] sm:$0xf]
      %v342 = vld [vmem:[%s253 + $0x20] sm:$0xf]
      %v343 = vld [vmem:[%s253 + $0x24] sm:$0xf]
      %v344 = vld [vmem:[%s253 + $0x28] sm:$0xf]
      %v345 = vld [vmem:[%s253 + $0x2c] sm:$0xf]
      %v346 = vld [vmem:[%s253 + $0x30] sm:$0xf]
      %v347 = vld [vmem:[%s253 + $0x34] sm:$0xf]
      %v348 = vld [vmem:[%s253 + $0x38] sm:$0xf]
      %v349 = vld [vmem:[%s253 + $0x3c] sm:$0xf]
      %v350 = vld [vmem:[%s253 + $0x40] sm:$0xf]
      %v351 = vld [vmem:[%s253 + $0x44] sm:$0xf]
      %v352 = vld [vmem:[%s253 + $0x48] sm:$0x3]
      %v417 = vunpack.c.l.b16 %v270
      %v418 = vunpack.c.h.b16 %v270
      %v419 = vunpack.c.l.b16 %v271
      %v420 = vunpack.c.h.b16 %v271
      %v421 = vunpack.c.l.b16 %v272
      %v422 = vunpack.c.h.b16 %v272
      %v423 = vunpack.c.l.b16 %v273
      %v424 = vunpack.c.h.b16 %v273
      %v425 = vunpack.c.l.b16 %v274
      %v426 = vunpack.c.h.b16 %v274
      %v427 = vunpack.c.l.b16 %v275
      %v428 = vunpack.c.h.b16 %v275
      %v429 = vunpack.c.l.b16 %v276
      %v430 = vunpack.c.h.b16 %v276
      %v431 = vunpack.c.l.b16 %v277
      %v432 = vunpack.c.h.b16 %v277
      %v433 = vunpack.c.l.b16 %v278
      %v434 = vunpack.c.h.b16 %v278
      %v435 = vunpack.c.l.b16 %v279
      %v436 = vunpack.c.h.b16 %v279
      %v437 = vunpack.c.l.b16 %v280
      %v438 = vunpack.c.h.b16 %v280
      %v439 = vunpack.c.l.b16 %v281
      %v440 = vunpack.c.h.b16 %v281
      %v441 = vunpack.c.l.b16 %v282
      %v442 = vunpack.c.h.b16 %v282
      %v443 = vunpack.c.l.b16 %v283
      %v444 = vunpack.c.h.b16 %v283
      %v445 = vunpack.c.l.b16 %v284
      %v446 = vunpack.c.h.b16 %v284
      %v447 = vunpack.c.l.b16 %v285
      %v448 = vunpack.c.h.b16 %v285
      %v449 = vunpack.c.l.b16 %v286
      %v450 = vunpack.c.h.b16 %v286
      %v451 = vunpack.c.l.b16 %v287
      %v452 = vunpack.c.h.b16 %v287
      %v453 = vunpack.c.l.b16 %v288
      %v454 = vunpack.c.h.b16 %v288
      %v455 = vunpack.c.l.b16 %v289
      %v456 = vunpack.c.h.b16 %v289
      %v457 = vunpack.c.l.b16 %v290
      %v458 = vunpack.c.h.b16 %v290
      %v459 = vunpack.c.l.b16 %v291
      %v460 = vunpack.c.h.b16 %v291
      %v461 = vunpack.c.l.b16 %v292
      %v462 = vunpack.c.h.b16 %v292
      %v463 = vunpack.c.l.b16 %v293
      %v464 = vunpack.c.h.b16 %v293
      %v465 = vunpack.c.l.b16 %v294
      %v466 = vunpack.c.h.b16 %v294
      %v467 = vunpack.c.l.b16 %v295
      %v468 = vunpack.c.h.b16 %v295
      %v469 = vunpack.c.l.b16 %v296
      %v470 = vunpack.c.h.b16 %v296
      %v471 = vunpack.c.l.b16 %v297
      %v472 = vunpack.c.h.b16 %v297
      %v473 = vunpack.c.l.b16 %v298
      %v474 = vunpack.c.h.b16 %v298
      %v475 = vunpack.c.l.b16 %v299
      %v476 = vunpack.c.h.b16 %v299
      %v477 = vunpack.c.l.b16 %v300
      %v478 = vunpack.c.h.b16 %v300
      %v479 = vunpack.c.l.b16 %v301
      %v480 = vunpack.c.h.b16 %v301
      %v481 = vunpack.c.l.b16 %v302
      %v482 = vunpack.c.h.b16 %v302
      %v483 = vunpack.c.l.b16 %v303
      %v484 = vunpack.c.h.b16 %v303
      %v485 = vunpack.c.l.b16 %v304
      %v486 = vunpack.c.h.b16 %v304
      %v487 = vunpack.c.l.b16 %v305
      %v488 = vunpack.c.h.b16 %v305
      %v489 = vunpack.c.l.b16 %v306
      %v490 = vunpack.c.h.b16 %v306
      %v491 = vunpack.c.l.b16 %v307
      %v492 = vunpack.c.h.b16 %v307
      %v493 = vunpack.c.l.b16 %v308
      %v494 = vunpack.c.h.b16 %v308
      %v495 = vunpack.c.l.b16 %v309
      %v496 = vunpack.c.h.b16 %v309
      %v497 = vunpack.c.l.b16 %v310
      %v498 = vunpack.c.h.b16 %v310
      %v499 = vunpack.c.l.b16 %v311
      %v500 = vunpack.c.h.b16 %v311
      %v501 = vunpack.c.l.b16 %v312
      %v502 = vunpack.c.h.b16 %v312
      %v503 = vunpack.c.l.b16 %v313
      %v504 = vunpack.c.h.b16 %v313
      %v505 = vunpack.c.l.b16 %v314
      %v506 = vunpack.c.h.b16 %v314
      %v507 = vunpack.c.l.b16 %v315
      %v508 = vunpack.c.h.b16 %v315
      %v509 = vunpack.c.l.b16 %v316
      %v510 = vunpack.c.h.b16 %v316
      %v511 = vunpack.c.l.b16 %v317
      %v512 = vunpack.c.h.b16 %v317
      %v513 = vunpack.c.l.b16 %v318
      %v514 = vunpack.c.h.b16 %v318
      %v515 = vunpack.c.l.b16 %v319
      %v516 = vunpack.c.h.b16 %v319
      %v517 = vunpack.c.l.b16 %v320
      %v518 = vunpack.c.h.b16 %v320
      %v519 = vunpack.c.l.b16 %v321
      %v520 = vunpack.c.h.b16 %v321
      %v521 = vunpack.c.l.b16 %v322
      %v522 = vunpack.c.h.b16 %v322
      %v523 = vunpack.c.l.b16 %v323
      %v524 = vunpack.c.h.b16 %v323
      %v525 = vunpack.c.l.b16 %v324
      %v526 = vunpack.c.h.b16 %v324
      %v527 = vunpack.c.l.b16 %v325
      %v528 = vunpack.c.h.b16 %v325
      %v529 = vunpack.c.l.b16 %v326
      %v530 = vunpack.c.h.b16 %v326
      %v531 = vunpack.c.l.b16 %v327
      %v532 = vunpack.c.h.b16 %v327
      %v533 = vunpack.c.l.b16 %v328
      %v534 = vunpack.c.h.b16 %v328
      %v535 = vunpack.c.l.b16 %v329
      %v536 = vunpack.c.h.b16 %v329
      %v537 = vunpack.c.l.b16 %v330
      %v538 = vunpack.c.h.b16 %v330
      %v539 = vunpack.c.l.b16 %v331
      %v540 = vunpack.c.h.b16 %v331
      %v541 = vunpack.c.l.b16 %v332
      %v542 = vunpack.c.h.b16 %v332
      %v543 = vunpack.c.l.b16 %v333
      %v544 = vunpack.c.h.b16 %v333
      %v545 = vpack.c.b16 %v419, %v417
      %v546 = vpack.c.b16 %v420, %v418
      %v547 = vpack.c.b16 %v423, %v421
      %v548 = vpack.c.b16 %v424, %v422
      %v549 = vpack.c.b16 %v427, %v425
      %v550 = vpack.c.b16 %v428, %v426
      %v551 = vpack.c.b16 %v431, %v429
      %v552 = vpack.c.b16 %v432, %v430
      %v553 = vpack.c.b16 %v435, %v433
      %v554 = vpack.c.b16 %v436, %v434
      %v555 = vpack.c.b16 %v439, %v437
      %v556 = vpack.c.b16 %v440, %v438
      %v557 = vpack.c.b16 %v443, %v441
      %v558 = vpack.c.b16 %v444, %v442
      %v559 = vpack.c.b16 %v447, %v445
      %v560 = vpack.c.b16 %v448, %v446
      %v561 = vpack.c.b16 %v451, %v449
      %v562 = vpack.c.b16 %v452, %v450
      %v563 = vpack.c.b16 %v455, %v453
      %v564 = vpack.c.b16 %v456, %v454
      %v565 = vpack.c.b16 %v459, %v457
      %v566 = vpack.c.b16 %v460, %v458
      %v567 = vpack.c.b16 %v463, %v461
      %v568 = vpack.c.b16 %v464, %v462
      %v569 = vpack.c.b16 %v467, %v465
      %v570 = vpack.c.b16 %v468, %v466
      %v571 = vpack.c.b16 %v471, %v469
      %v572 = vpack.c.b16 %v472, %v470
      %v573 = vpack.c.b16 %v475, %v473
      %v574 = vpack.c.b16 %v476, %v474
      %v575 = vpack.c.b16 %v479, %v477
      %v576 = vpack.c.b16 %v480, %v478
      %v577 = vpack.c.b16 %v483, %v481
      %v578 = vpack.c.b16 %v484, %v482
      %v579 = vpack.c.b16 %v487, %v485
      %v580 = vpack.c.b16 %v488, %v486
      %v581 = vpack.c.b16 %v491, %v489
      %v582 = vpack.c.b16 %v492, %v490
      %v583 = vpack.c.b16 %v495, %v493
      %v584 = vpack.c.b16 %v496, %v494
      %v585 = vpack.c.b16 %v499, %v497
      %v586 = vpack.c.b16 %v500, %v498
      %v587 = vpack.c.b16 %v503, %v501
      %v588 = vpack.c.b16 %v504, %v502
      %v589 = vpack.c.b16 %v507, %v505
      %v590 = vpack.c.b16 %v508, %v506
      %v591 = vpack.c.b16 %v511, %v509
      %v592 = vpack.c.b16 %v512, %v510
      %v593 = vpack.c.b16 %v515, %v513
      %v594 = vpack.c.b16 %v516, %v514
      %v595 = vpack.c.b16 %v519, %v517
      %v596 = vpack.c.b16 %v520, %v518
      %v597 = vpack.c.b16 %v523, %v521
      %v598 = vpack.c.b16 %v524, %v522
      %v599 = vpack.c.b16 %v527, %v525
      %v600 = vpack.c.b16 %v528, %v526
      %v601 = vpack.c.b16 %v531, %v529
      %v602 = vpack.c.b16 %v532, %v530
      %v603 = vpack.c.b16 %v535, %v533
      %v604 = vpack.c.b16 %v536, %v534
      %v605 = vpack.c.b16 %v539, %v537
      %v606 = vpack.c.b16 %v540, %v538
      %v607 = vpack.c.b16 %v543, %v541
      %v608 = vpack.c.b16 %v544, %v542
      %v660 = vunpack.c.l.b16 %v334
      %v661 = vunpack.c.l.b16 %v335
      %v662 = vunpack.c.l.b16 %v336
      %v663 = vunpack.c.l.b16 %v337
      %v664 = vunpack.c.l.b16 %v338
      %v665 = vunpack.c.l.b16 %v339
      %v666 = vunpack.c.l.b16 %v340
      %v667 = vunpack.c.l.b16 %v341
      %v668 = vunpack.c.l.b16 %v342
      %v669 = vunpack.c.l.b16 %v343
      %v670 = vunpack.c.l.b16 %v344
      %v671 = vunpack.c.l.b16 %v345
      %v672 = vunpack.c.l.b16 %v346
      %v673 = vunpack.c.l.b16 %v347
      %v674 = vunpack.c.l.b16 %v348
      %v675 = vunpack.c.l.b16 %v349
      %v676 = vunpack.c.l.b16 %v350
      %v677 = vunpack.c.l.b16 %v351
      %v678 = vunpack.c.l.b16 %v352
      %v679 = vpack.c.b16 %v661, %v660
      %v680 = vpack.c.b16 %v663, %v662
      %v681 = vpack.c.b16 %v665, %v664
      %v682 = vpack.c.b16 %v667, %v666
      %v683 = vpack.c.b16 %v669, %v668
      %v684 = vpack.c.b16 %v671, %v670
      %v685 = vpack.c.b16 %v673, %v672
      %v686 = vpack.c.b16 %v675, %v674
      %v687 = vpack.c.b16 %v677, %v676
      %v688 = vpack.c.b16 %v678, %v678
      %vm698 = vcmask 154624
      %v700 = vsel %vm698, %v546, 0
      %v703 = vsel %vm698, %v548, 0
      %v706 = vsel %vm698, %v550, 0
      %v709 = vsel %vm698, %v552, 0
      %v712 = vsel %vm698, %v554, 0
      %v715 = vsel %vm698, %v556, 0
      %v718 = vsel %vm698, %v558, 0
      %v721 = vsel %vm698, %v560, 0
      %v724 = vsel %vm698, %v562, 0
      %v727 = vsel %vm698, %v564, 0
      %v730 = vsel %vm698, %v566, 0
      %v733 = vsel %vm698, %v568, 0
      %v736 = vsel %vm698, %v570, 0
      %v739 = vsel %vm698, %v572, 0
      %v742 = vsel %vm698, %v574, 0
      %v745 = vsel %vm698, %v576, 0
      %v748 = vsel %vm698, %v578, 0
      %v751 = vsel %vm698, %v580, 0
      %v754 = vsel %vm698, %v582, 0
      %v757 = vsel %vm698, %v584, 0
      %v760 = vsel %vm698, %v586, 0
      %v763 = vsel %vm698, %v588, 0
      %v766 = vsel %vm698, %v590, 0
      %v769 = vsel %vm698, %v592, 0
      %v772 = vsel %vm698, %v594, 0
      %v775 = vsel %vm698, %v596, 0
      %v778 = vsel %vm698, %v598, 0
      %v781 = vsel %vm698, %v600, 0
      %v784 = vsel %vm698, %v602, 0
      %v787 = vsel %vm698, %v604, 0
      %v790 = vsel %vm698, %v606, 0
      %v793 = vsel %vm698, %v608, 0
      %vm795 = vcmask 1040384
      %vm796 = vcmask 1041408
      %v797 = vsel %vm795, 4294967295, 65535
      %v798 = vsel %vm796, %v797, 0
      %v800 = vand.u32 %v688, %v798
      %802 = vmatpush.bf16.msra.mxu0 %v686
      %803 = vmatpush.bf16.msra.mxu0 %v685
      %804 = vmatpush.bf16.msra.mxu0 %v684
      %805 = vmatpush.bf16.msra.mxu0 %v683
      %806 = vmatpush.bf16.msra.mxu0 %v682
      %807 = vmatpush.bf16.msra.mxu0 %v681
      %808 = vmatpush.bf16.msra.mxu0 %v680
      %809 = vmatpush.bf16.msra.mxu0 %v679
      %810 = vmatmul.bf16.gmra.mxu0 %v545
      %v811 = vpop.f32.mrf.mxu0
      %v812 = vadd.f32 0.0, %v811
      %v813 = vpop.f32.mrf.mxu0
      %v814 = vadd.f32 0.0, %v813
      %815 = vmatmul.bf16.gmra.mxu0 %v547
      %v816 = vpop.f32.mrf.mxu0
      %v817 = vadd.f32 0.0, %v816
      %v818 = vpop.f32.mrf.mxu0
      %v819 = vadd.f32 0.0, %v818
      %820 = vmatmul.bf16.gmra.mxu0 %v549
      %v821 = vpop.f32.mrf.mxu0
      %v822 = vadd.f32 0.0, %v821
      %v823 = vpop.f32.mrf.mxu0
      %v824 = vadd.f32 0.0, %v823
      %825 = vmatmul.bf16.gmra.mxu0 %v551
      %v826 = vpop.f32.mrf.mxu0
      %v827 = vadd.f32 0.0, %v826
      %v828 = vpop.f32.mrf.mxu0
      %v829 = vadd.f32 0.0, %v828
      %830 = vmatmul.bf16.gmra.mxu0 %v553
      %v831 = vpop.f32.mrf.mxu0
      %v832 = vadd.f32 0.0, %v831
      %v833 = vpop.f32.mrf.mxu0
      %v834 = vadd.f32 0.0, %v833
      %835 = vmatmul.bf16.gmra.mxu0 %v555
      %v836 = vpop.f32.mrf.mxu0
      %v837 = vadd.f32 0.0, %v836
      %v838 = vpop.f32.mrf.mxu0
      %v839 = vadd.f32 0.0, %v838
      %840 = vmatmul.bf16.gmra.mxu0 %v557
      %v841 = vpop.f32.mrf.mxu0
      %v842 = vadd.f32 0.0, %v841
      %v843 = vpop.f32.mrf.mxu0
      %v844 = vadd.f32 0.0, %v843
      %845 = vmatmul.bf16.gmra.mxu0 %v559
      %v846 = vpop.f32.mrf.mxu0
      %v847 = vadd.f32 0.0, %v846
      %v848 = vpop.f32.mrf.mxu0
      %v849 = vadd.f32 0.0, %v848
      %850 = vmatmul.bf16.gmra.mxu0 %v561
      %v851 = vpop.f32.mrf.mxu0
      %v852 = vadd.f32 0.0, %v851
      %v853 = vpop.f32.mrf.mxu0
      %v854 = vadd.f32 0.0, %v853
      %855 = vmatmul.bf16.gmra.mxu0 %v563
      %v856 = vpop.f32.mrf.mxu0
      %v857 = vadd.f32 0.0, %v856
      %v858 = vpop.f32.mrf.mxu0
      %v859 = vadd.f32 0.0, %v858
      %860 = vmatmul.bf16.gmra.mxu0 %v565
      %v861 = vpop.f32.mrf.mxu0
      %v862 = vadd.f32 0.0, %v861
      %v863 = vpop.f32.mrf.mxu0
      %v864 = vadd.f32 0.0, %v863
      %865 = vmatmul.bf16.gmra.mxu0 %v567
      %v866 = vpop.f32.mrf.mxu0
      %v867 = vadd.f32 0.0, %v866
      %v868 = vpop.f32.mrf.mxu0
      %v869 = vadd.f32 0.0, %v868
      %870 = vmatmul.bf16.gmra.mxu0 %v569
      %v871 = vpop.f32.mrf.mxu0
      %v872 = vadd.f32 0.0, %v871
      %v873 = vpop.f32.mrf.mxu0
      %v874 = vadd.f32 0.0, %v873
      %875 = vmatmul.bf16.gmra.mxu0 %v571
      %v876 = vpop.f32.mrf.mxu0
      %v877 = vadd.f32 0.0, %v876
      %v878 = vpop.f32.mrf.mxu0
      %v879 = vadd.f32 0.0, %v878
      %880 = vmatmul.bf16.gmra.mxu0 %v573
      %v881 = vpop.f32.mrf.mxu0
      %v882 = vadd.f32 0.0, %v881
      %v883 = vpop.f32.mrf.mxu0
      %v884 = vadd.f32 0.0, %v883
      %885 = vmatmul.bf16.gmra.mxu0 %v575
      %v886 = vpop.f32.mrf.mxu0
      %v887 = vadd.f32 0.0, %v886
      %v888 = vpop.f32.mrf.mxu0
      %v889 = vadd.f32 0.0, %v888
      %890 = vmatmul.bf16.gmra.mxu0 %v577
      %v891 = vpop.f32.mrf.mxu0
      %v892 = vadd.f32 0.0, %v891
      %v893 = vpop.f32.mrf.mxu0
      %v894 = vadd.f32 0.0, %v893
      %895 = vmatmul.bf16.gmra.mxu0 %v579
      %v896 = vpop.f32.mrf.mxu0
      %v897 = vadd.f32 0.0, %v896
      %v898 = vpop.f32.mrf.mxu0
      %v899 = vadd.f32 0.0, %v898
      %900 = vmatmul.bf16.gmra.mxu0 %v581
      %v901 = vpop.f32.mrf.mxu0
      %v902 = vadd.f32 0.0, %v901
      %v903 = vpop.f32.mrf.mxu0
      %v904 = vadd.f32 0.0, %v903
      %905 = vmatmul.bf16.gmra.mxu0 %v583
      %v906 = vpop.f32.mrf.mxu0
      %v907 = vadd.f32 0.0, %v906
      %v908 = vpop.f32.mrf.mxu0
      %v909 = vadd.f32 0.0, %v908
      %910 = vmatmul.bf16.gmra.mxu0 %v585
      %v911 = vpop.f32.mrf.mxu0
      %v912 = vadd.f32 0.0, %v911
      %v913 = vpop.f32.mrf.mxu0
      %v914 = vadd.f32 0.0, %v913
      %915 = vmatmul.bf16.gmra.mxu0 %v587
      %v916 = vpop.f32.mrf.mxu0
      %v917 = vadd.f32 0.0, %v916
      %v918 = vpop.f32.mrf.mxu0
      %v919 = vadd.f32 0.0, %v918
      %920 = vmatmul.bf16.gmra.mxu0 %v589
      %v921 = vpop.f32.mrf.mxu0
      %v922 = vadd.f32 0.0, %v921
      %v923 = vpop.f32.mrf.mxu0
      %v924 = vadd.f32 0.0, %v923
      %925 = vmatmul.bf16.gmra.mxu0 %v591
      %v926 = vpop.f32.mrf.mxu0
      %v927 = vadd.f32 0.0, %v926
      %v928 = vpop.f32.mrf.mxu0
      %v929 = vadd.f32 0.0, %v928
      %930 = vmatmul.bf16.gmra.mxu0 %v593
      %v931 = vpop.f32.mrf.mxu0
      %v932 = vadd.f32 0.0, %v931
      %v933 = vpop.f32.mrf.mxu0
      %v934 = vadd.f32 0.0, %v933
      %935 = vmatmul.bf16.gmra.mxu0 %v595
      %v936 = vpop.f32.mrf.mxu0
      %v937 = vadd.f32 0.0, %v936
      %v938 = vpop.f32.mrf.mxu0
      %v939 = vadd.f32 0.0, %v938
      %940 = vmatmul.bf16.gmra.mxu0 %v597
      %v941 = vpop.f32.mrf.mxu0
      %v942 = vadd.f32 0.0, %v941
      %v943 = vpop.f32.mrf.mxu0
      %v944 = vadd.f32 0.0, %v943
      %945 = vmatmul.bf16.gmra.mxu0 %v599
      %v946 = vpop.f32.mrf.mxu0
      %v947 = vadd.f32 0.0, %v946
      %v948 = vpop.f32.mrf.mxu0
      %v949 = vadd.f32 0.0, %v948
      %950 = vmatmul.bf16.gmra.mxu0 %v601
      %v951 = vpop.f32.mrf.mxu0
      %v952 = vadd.f32 0.0, %v951
      %v953 = vpop.f32.mrf.mxu0
      %v954 = vadd.f32 0.0, %v953
      %955 = vmatmul.bf16.gmra.mxu0 %v603
      %v956 = vpop.f32.mrf.mxu0
      %v957 = vadd.f32 0.0, %v956
      %v958 = vpop.f32.mrf.mxu0
      %v959 = vadd.f32 0.0, %v958
      %960 = vmatmul.bf16.gmra.mxu0 %v605
      %v961 = vpop.f32.mrf.mxu0
      %v962 = vadd.f32 0.0, %v961
      %v963 = vpop.f32.mrf.mxu0
      %v964 = vadd.f32 0.0, %v963
      %965 = vmatmul.bf16.gmra.mxu0 %v607
      %v966 = vpop.f32.mrf.mxu0
      %v967 = vadd.f32 0.0, %v966
      %v968 = vpop.f32.mrf.mxu0
      %v969 = vadd.f32 0.0, %v968
      %970 = vdwg.mxu0
      %971 = vmatpush.bf16.msra.mxu0 0
      %972 = vmatpush.bf16.msra.mxu0 0
      %973 = vmatpush.bf16.msra.mxu0 0
      %974 = vmatpush.bf16.msra.mxu0 0
      %975 = vmatpush.bf16.msra.mxu0 0
      %976 = vmatpush.bf16.msra.mxu0 0
      %977 = vmatpush.bf16.msra.mxu0 %v800
      %978 = vmatpush.bf16.msra.mxu0 %v687
      %979 = vmatmul.bf16.gmra.mxu0 %v700
      %v980 = vpop.f32.mrf.mxu0
      %v981 = vadd.f32 %v812, %v980
      %v982 = vpop.f32.mrf.mxu0
      %v983 = vadd.f32 %v814, %v982
      %984 = vmatmul.bf16.gmra.mxu0 %v703
      %v985 = vpop.f32.mrf.mxu0
      %v986 = vadd.f32 %v817, %v985
      %v987 = vpop.f32.mrf.mxu0
      %v988 = vadd.f32 %v819, %v987
      %989 = vmatmul.bf16.gmra.mxu0 %v706
      %v990 = vpop.f32.mrf.mxu0
      %v991 = vadd.f32 %v822, %v990
      %v992 = vpop.f32.mrf.mxu0
      %v993 = vadd.f32 %v824, %v992
      %994 = vmatmul.bf16.gmra.mxu0 %v709
      %v995 = vpop.f32.mrf.mxu0
      %v996 = vadd.f32 %v827, %v995
      %v997 = vpop.f32.mrf.mxu0
      %v998 = vadd.f32 %v829, %v997
      %999 = vmatmul.bf16.gmra.mxu0 %v712
      %v1000 = vpop.f32.mrf.mxu0
      %v1001 = vadd.f32 %v832, %v1000
      %v1002 = vpop.f32.mrf.mxu0
      %v1003 = vadd.f32 %v834, %v1002
      %1004 = vmatmul.bf16.gmra.mxu0 %v715
      %v1005 = vpop.f32.mrf.mxu0
      %v1006 = vadd.f32 %v837, %v1005
      %v1007 = vpop.f32.mrf.mxu0
      %v1008 = vadd.f32 %v839, %v1007
      %1009 = vmatmul.bf16.gmra.mxu0 %v718
      %v1010 = vpop.f32.mrf.mxu0
      %v1011 = vadd.f32 %v842, %v1010
      %v1012 = vpop.f32.mrf.mxu0
      %v1013 = vadd.f32 %v844, %v1012
      %1014 = vmatmul.bf16.gmra.mxu0 %v721
      %v1015 = vpop.f32.mrf.mxu0
      %v1016 = vadd.f32 %v847, %v1015
      %v1017 = vpop.f32.mrf.mxu0
      %v1018 = vadd.f32 %v849, %v1017
      %1019 = vmatmul.bf16.gmra.mxu0 %v724
      %v1020 = vpop.f32.mrf.mxu0
      %v1021 = vadd.f32 %v852, %v1020
      %v1022 = vpop.f32.mrf.mxu0
      %v1023 = vadd.f32 %v854, %v1022
      %1024 = vmatmul.bf16.gmra.mxu0 %v727
      %v1025 = vpop.f32.mrf.mxu0
      %v1026 = vadd.f32 %v857, %v1025
      %v1027 = vpop.f32.mrf.mxu0
      %v1028 = vadd.f32 %v859, %v1027
      %1029 = vmatmul.bf16.gmra.mxu0 %v730
      %v1030 = vpop.f32.mrf.mxu0
      %v1031 = vadd.f32 %v862, %v1030
      %v1032 = vpop.f32.mrf.mxu0
      %v1033 = vadd.f32 %v864, %v1032
      %1034 = vmatmul.bf16.gmra.mxu0 %v733
      %v1035 = vpop.f32.mrf.mxu0
      %v1036 = vadd.f32 %v867, %v1035
      %v1037 = vpop.f32.mrf.mxu0
      %v1038 = vadd.f32 %v869, %v1037
      %1039 = vmatmul.bf16.gmra.mxu0 %v736
      %v1040 = vpop.f32.mrf.mxu0
      %v1041 = vadd.f32 %v872, %v1040
      %v1042 = vpop.f32.mrf.mxu0
      %v1043 = vadd.f32 %v874, %v1042
      %1044 = vmatmul.bf16.gmra.mxu0 %v739
      %v1045 = vpop.f32.mrf.mxu0
      %v1046 = vadd.f32 %v877, %v1045
      %v1047 = vpop.f32.mrf.mxu0
      %v1048 = vadd.f32 %v879, %v1047
      %1049 = vmatmul.bf16.gmra.mxu0 %v742
      %v1050 = vpop.f32.mrf.mxu0
      %v1051 = vadd.f32 %v882, %v1050
      %v1052 = vpop.f32.mrf.mxu0
      %v1053 = vadd.f32 %v884, %v1052
      %1054 = vmatmul.bf16.gmra.mxu0 %v745
      %v1055 = vpop.f32.mrf.mxu0
      %v1056 = vadd.f32 %v887, %v1055
      %v1057 = vpop.f32.mrf.mxu0
      %v1058 = vadd.f32 %v889, %v1057
      %1059 = vmatmul.bf16.gmra.mxu0 %v748
      %v1060 = vpop.f32.mrf.mxu0
      %v1061 = vadd.f32 %v892, %v1060
      %v1062 = vpop.f32.mrf.mxu0
      %v1063 = vadd.f32 %v894, %v1062
      %1064 = vmatmul.bf16.gmra.mxu0 %v751
      %v1065 = vpop.f32.mrf.mxu0
      %v1066 = vadd.f32 %v897, %v1065
      %v1067 = vpop.f32.mrf.mxu0
      %v1068 = vadd.f32 %v899, %v1067
      %1069 = vmatmul.bf16.gmra.mxu0 %v754
      %v1070 = vpop.f32.mrf.mxu0
      %v1071 = vadd.f32 %v902, %v1070
      %v1072 = vpop.f32.mrf.mxu0
      %v1073 = vadd.f32 %v904, %v1072
      %1074 = vmatmul.bf16.gmra.mxu0 %v757
      %v1075 = vpop.f32.mrf.mxu0
      %v1076 = vadd.f32 %v907, %v1075
      %v1077 = vpop.f32.mrf.mxu0
      %v1078 = vadd.f32 %v909, %v1077
      %1079 = vmatmul.bf16.gmra.mxu0 %v760
      %v1080 = vpop.f32.mrf.mxu0
      %v1081 = vadd.f32 %v912, %v1080
      %v1082 = vpop.f32.mrf.mxu0
      %v1083 = vadd.f32 %v914, %v1082
      %1084 = vmatmul.bf16.gmra.mxu0 %v763
      %v1085 = vpop.f32.mrf.mxu0
      %v1086 = vadd.f32 %v917, %v1085
      %v1087 = vpop.f32.mrf.mxu0
      %v1088 = vadd.f32 %v919, %v1087
      %1089 = vmatmul.bf16.gmra.mxu0 %v766
      %v1090 = vpop.f32.mrf.mxu0
      %v1091 = vadd.f32 %v922, %v1090
      %v1092 = vpop.f32.mrf.mxu0
      %v1093 = vadd.f32 %v924, %v1092
      %1094 = vmatmul.bf16.gmra.mxu0 %v769
      %v1095 = vpop.f32.mrf.mxu0
      %v1096 = vadd.f32 %v927, %v1095
      %v1097 = vpop.f32.mrf.mxu0
      %v1098 = vadd.f32 %v929, %v1097
      %1099 = vmatmul.bf16.gmra.mxu0 %v772
      %v1100 = vpop.f32.mrf.mxu0
      %v1101 = vadd.f32 %v932, %v1100
      %v1102 = vpop.f32.mrf.mxu0
      %v1103 = vadd.f32 %v934, %v1102
      %1104 = vmatmul.bf16.gmra.mxu0 %v775
      %v1105 = vpop.f32.mrf.mxu0
      %v1106 = vadd.f32 %v937, %v1105
      %v1107 = vpop.f32.mrf.mxu0
      %v1108 = vadd.f32 %v939, %v1107
      %1109 = vmatmul.bf16.gmra.mxu0 %v778
      %v1110 = vpop.f32.mrf.mxu0
      %v1111 = vadd.f32 %v942, %v1110
      %v1112 = vpop.f32.mrf.mxu0
      %v1113 = vadd.f32 %v944, %v1112
      %1114 = vmatmul.bf16.gmra.mxu0 %v781
      %v1115 = vpop.f32.mrf.mxu0
      %v1116 = vadd.f32 %v947, %v1115
      %v1117 = vpop.f32.mrf.mxu0
      %v1118 = vadd.f32 %v949, %v1117
      %1119 = vmatmul.bf16.gmra.mxu0 %v784
      %v1120 = vpop.f32.mrf.mxu0
      %v1121 = vadd.f32 %v952, %v1120
      %v1122 = vpop.f32.mrf.mxu0
      %v1123 = vadd.f32 %v954, %v1122
      %1124 = vmatmul.bf16.gmra.mxu0 %v787
      %v1125 = vpop.f32.mrf.mxu0
      %v1126 = vadd.f32 %v957, %v1125
      %v1127 = vpop.f32.mrf.mxu0
      %v1128 = vadd.f32 %v959, %v1127
      %1129 = vmatmul.bf16.gmra.mxu0 %v790
      %v1130 = vpop.f32.mrf.mxu0
      %v1131 = vadd.f32 %v962, %v1130
      %v1132 = vpop.f32.mrf.mxu0
      %v1133 = vadd.f32 %v964, %v1132
      %1134 = vmatmul.bf16.gmra.mxu0 %v793
      %v1135 = vpop.f32.mrf.mxu0
      %v1136 = vadd.f32 %v967, %v1135
      %v1137 = vpop.f32.mrf.mxu0
      %v1138 = vadd.f32 %v969, %v1137
      %1139 = vdwg.mxu0
      %v1140 = vld [vmem:[%s256] sm:$0x1]
      %v1142 = vperm.slane %v1140, 0
      %v1144 = vmul.f32 %v981, %v1142
      %v1145 = vmul.f32 %v983, %v1142
      %v1146 = vmul.f32 %v986, %v1142
      %v1147 = vmul.f32 %v988, %v1142
      %v1148 = vmul.f32 %v991, %v1142
      %v1149 = vmul.f32 %v993, %v1142
      %v1150 = vmul.f32 %v996, %v1142
      %v1151 = vmul.f32 %v998, %v1142
      %v1152 = vmul.f32 %v1001, %v1142
      %v1153 = vmul.f32 %v1003, %v1142
      %v1154 = vmul.f32 %v1006, %v1142
      %v1155 = vmul.f32 %v1008, %v1142
      %v1156 = vmul.f32 %v1011, %v1142
      %v1157 = vmul.f32 %v1013, %v1142
      %v1158 = vmul.f32 %v1016, %v1142
      %v1159 = vmul.f32 %v1018, %v1142
      %v1160 = vmul.f32 %v1021, %v1142
      %v1161 = vmul.f32 %v1023, %v1142
      %v1162 = vmul.f32 %v1026, %v1142
      %v1163 = vmul.f32 %v1028, %v1142
      %v1164 = vmul.f32 %v1031, %v1142
      %v1165 = vmul.f32 %v1033, %v1142
      %v1166 = vmul.f32 %v1036, %v1142
      %v1167 = vmul.f32 %v1038, %v1142
      %v1168 = vmul.f32 %v1041, %v1142
      %v1169 = vmul.f32 %v1043, %v1142
      %v1170 = vmul.f32 %v1046, %v1142
      %v1171 = vmul.f32 %v1048, %v1142
      %v1172 = vmul.f32 %v1051, %v1142
      %v1173 = vmul.f32 %v1053, %v1142
      %v1174 = vmul.f32 %v1056, %v1142
      %v1175 = vmul.f32 %v1058, %v1142
      %v1176 = vmul.f32 %v1061, %v1142
      %v1177 = vmul.f32 %v1063, %v1142
      %v1178 = vmul.f32 %v1066, %v1142
      %v1179 = vmul.f32 %v1068, %v1142
      %v1180 = vmul.f32 %v1071, %v1142
      %v1181 = vmul.f32 %v1073, %v1142
      %v1182 = vmul.f32 %v1076, %v1142
      %v1183 = vmul.f32 %v1078, %v1142
      %v1184 = vmul.f32 %v1081, %v1142
      %v1185 = vmul.f32 %v1083, %v1142
      %v1186 = vmul.f32 %v1086, %v1142
      %v1187 = vmul.f32 %v1088, %v1142
      %v1188 = vmul.f32 %v1091, %v1142
      %v1189 = vmul.f32 %v1093, %v1142
      %v1190 = vmul.f32 %v1096, %v1142
      %v1191 = vmul.f32 %v1098, %v1142
      %v1192 = vmul.f32 %v1101, %v1142
      %v1193 = vmul.f32 %v1103, %v1142
      %v1194 = vmul.f32 %v1106, %v1142
      %v1195 = vmul.f32 %v1108, %v1142
      %v1196 = vmul.f32 %v1111, %v1142
      %v1197 = vmul.f32 %v1113, %v1142
      %v1198 = vmul.f32 %v1116, %v1142
      %v1199 = vmul.f32 %v1118, %v1142
      %v1200 = vmul.f32 %v1121, %v1142
      %v1201 = vmul.f32 %v1123, %v1142
      %v1202 = vmul.f32 %v1126, %v1142
      %v1203 = vmul.f32 %v1128, %v1142
      %v1204 = vmul.f32 %v1131, %v1142
      %v1205 = vmul.f32 %v1133, %v1142
      %v1206 = vmul.f32 %v1136, %v1142
      %v1207 = vmul.f32 %v1138, %v1142
      %v1208 = vld [vmem:[%s259] sm:$0x1]
      %v1210 = vperm.slane %v1208, 0
      %v1212 = vadd.f32 %v1144, %v1210
      %v1213 = vadd.f32 %v1145, %v1210
      %v1214 = vadd.f32 %v1146, %v1210
      %v1215 = vadd.f32 %v1147, %v1210
      %v1216 = vadd.f32 %v1148, %v1210
      %v1217 = vadd.f32 %v1149, %v1210
      %v1218 = vadd.f32 %v1150, %v1210
      %v1219 = vadd.f32 %v1151, %v1210
      %v1220 = vadd.f32 %v1152, %v1210
      %v1221 = vadd.f32 %v1153, %v1210
      %v1222 = vadd.f32 %v1154, %v1210
      %v1223 = vadd.f32 %v1155, %v1210
      %v1224 = vadd.f32 %v1156, %v1210
      %v1225 = vadd.f32 %v1157, %v1210
      %v1226 = vadd.f32 %v1158, %v1210
      %v1227 = vadd.f32 %v1159, %v1210
      %v1228 = vadd.f32 %v1160, %v1210
      %v1229 = vadd.f32 %v1161, %v1210
      %v1230 = vadd.f32 %v1162, %v1210
      %v1231 = vadd.f32 %v1163, %v1210
      %v1232 = vadd.f32 %v1164, %v1210
      %v1233 = vadd.f32 %v1165, %v1210
      %v1234 = vadd.f32 %v1166, %v1210
      %v1235 = vadd.f32 %v1167, %v1210
      %v1236 = vadd.f32 %v1168, %v1210
      %v1237 = vadd.f32 %v1169, %v1210
      %v1238 = vadd.f32 %v1170, %v1210
      %v1239 = vadd.f32 %v1171, %v1210
      %v1240 = vadd.f32 %v1172, %v1210
      %v1241 = vadd.f32 %v1173, %v1210
      %v1242 = vadd.f32 %v1174, %v1210
      %v1243 = vadd.f32 %v1175, %v1210
      %v1244 = vadd.f32 %v1176, %v1210
      %v1245 = vadd.f32 %v1177, %v1210
      %v1246 = vadd.f32 %v1178, %v1210
      %v1247 = vadd.f32 %v1179, %v1210
      %v1248 = vadd.f32 %v1180, %v1210
      %v1249 = vadd.f32 %v1181, %v1210
      %v1250 = vadd.f32 %v1182, %v1210
      %v1251 = vadd.f32 %v1183, %v1210
      %v1252 = vadd.f32 %v1184, %v1210
      %v1253 = vadd.f32 %v1185, %v1210
      %v1254 = vadd.f32 %v1186, %v1210
      %v1255 = vadd.f32 %v1187, %v1210
      %v1256 = vadd.f32 %v1188, %v1210
      %v1257 = vadd.f32 %v1189, %v1210
      %v1258 = vadd.f32 %v1190, %v1210
      %v1259 = vadd.f32 %v1191, %v1210
      %v1260 = vadd.f32 %v1192, %v1210
      %v1261 = vadd.f32 %v1193, %v1210
      %v1262 = vadd.f32 %v1194, %v1210
      %v1263 = vadd.f32 %v1195, %v1210
      %v1264 = vadd.f32 %v1196, %v1210
      %v1265 = vadd.f32 %v1197, %v1210
      %v1266 = vadd.f32 %v1198, %v1210
      %v1267 = vadd.f32 %v1199, %v1210
      %v1268 = vadd.f32 %v1200, %v1210
      %v1269 = vadd.f32 %v1201, %v1210
      %v1270 = vadd.f32 %v1202, %v1210
      %v1271 = vadd.f32 %v1203, %v1210
      %v1272 = vadd.f32 %v1204, %v1210
      %v1273 = vadd.f32 %v1205, %v1210
      %v1274 = vadd.f32 %v1206, %v1210
      %v1275 = vadd.f32 %v1207, %v1210
      %v1276 = vmax.f32 %v1212, 0.0
      %v1277 = vmax.f32 %v1213, 0.0
      %v1278 = vmax.f32 %v1214, 0.0
      %v1279 = vmax.f32 %v1215, 0.0
      %v1280 = vmax.f32 %v1216, 0.0
      %v1281 = vmax.f32 %v1217, 0.0
      %v1282 = vmax.f32 %v1218, 0.0
      %v1283 = vmax.f32 %v1219, 0.0
      %v1284 = vmax.f32 %v1220, 0.0
      %v1285 = vmax.f32 %v1221, 0.0
      %v1286 = vmax.f32 %v1222, 0.0
      %v1287 = vmax.f32 %v1223, 0.0
      %v1288 = vmax.f32 %v1224, 0.0
      %v1289 = vmax.f32 %v1225, 0.0
      %v1290 = vmax.f32 %v1226, 0.0
      %v1291 = vmax.f32 %v1227, 0.0
      %v1292 = vmax.f32 %v1228, 0.0
      %v1293 = vmax.f32 %v1229, 0.0
      %v1294 = vmax.f32 %v1230, 0.0
      %v1295 = vmax.f32 %v1231, 0.0
      %v1296 = vmax.f32 %v1232, 0.0
      %v1297 = vmax.f32 %v1233, 0.0
      %v1298 = vmax.f32 %v1234, 0.0
      %v1299 = vmax.f32 %v1235, 0.0
      %v1300 = vmax.f32 %v1236, 0.0
      %v1301 = vmax.f32 %v1237, 0.0
      %v1302 = vmax.f32 %v1238, 0.0
      %v1303 = vmax.f32 %v1239, 0.0
      %v1304 = vmax.f32 %v1240, 0.0
      %v1305 = vmax.f32 %v1241, 0.0
      %v1306 = vmax.f32 %v1242, 0.0
      %v1307 = vmax.f32 %v1243, 0.0
      %v1308 = vmax.f32 %v1244, 0.0
      %v1309 = vmax.f32 %v1245, 0.0
      %v1310 = vmax.f32 %v1246, 0.0
      %v1311 = vmax.f32 %v1247, 0.0
      %v1312 = vmax.f32 %v1248, 0.0
      %v1313 = vmax.f32 %v1249, 0.0
      %v1314 = vmax.f32 %v1250, 0.0
      %v1315 = vmax.f32 %v1251, 0.0
      %v1316 = vmax.f32 %v1252, 0.0
      %v1317 = vmax.f32 %v1253, 0.0
      %v1318 = vmax.f32 %v1254, 0.0
      %v1319 = vmax.f32 %v1255, 0.0
      %v1320 = vmax.f32 %v1256, 0.0
      %v1321 = vmax.f32 %v1257, 0.0
      %v1322 = vmax.f32 %v1258, 0.0
      %v1323 = vmax.f32 %v1259, 0.0
      %v1324 = vmax.f32 %v1260, 0.0
      %v1325 = vmax.f32 %v1261, 0.0
      %v1326 = vmax.f32 %v1262, 0.0
      %v1327 = vmax.f32 %v1263, 0.0
      %v1328 = vmax.f32 %v1264, 0.0
      %v1329 = vmax.f32 %v1265, 0.0
      %v1330 = vmax.f32 %v1266, 0.0
      %v1331 = vmax.f32 %v1267, 0.0
      %v1332 = vmax.f32 %v1268, 0.0
      %v1333 = vmax.f32 %v1269, 0.0
      %v1334 = vmax.f32 %v1270, 0.0
      %v1335 = vmax.f32 %v1271, 0.0
      %v1336 = vmax.f32 %v1272, 0.0
      %v1337 = vmax.f32 %v1273, 0.0
      %v1338 = vmax.f32 %v1274, 0.0
      %v1339 = vmax.f32 %v1275, 0.0
      %v1340 = vpack.c.bf16 %v1276, %v1276
      %v1341 = vpack.c.bf16 %v1277, %v1277
      %v1342 = vpack.c.bf16 %v1278, %v1278
      %v1343 = vpack.c.bf16 %v1279, %v1279
      %v1344 = vpack.c.bf16 %v1280, %v1280
      %v1345 = vpack.c.bf16 %v1281, %v1281
      %v1346 = vpack.c.bf16 %v1282, %v1282
      %v1347 = vpack.c.bf16 %v1283, %v1283
      %v1348 = vpack.c.bf16 %v1284, %v1284
      %v1349 = vpack.c.bf16 %v1285, %v1285
      %v1350 = vpack.c.bf16 %v1286, %v1286
      %v1351 = vpack.c.bf16 %v1287, %v1287
      %v1352 = vpack.c.bf16 %v1288, %v1288
      %v1353 = vpack.c.bf16 %v1289, %v1289
      %v1354 = vpack.c.bf16 %v1290, %v1290
      %v1355 = vpack.c.bf16 %v1291, %v1291
      %v1356 = vpack.c.bf16 %v1292, %v1292
      %v1357 = vpack.c.bf16 %v1293, %v1293
      %v1358 = vpack.c.bf16 %v1294, %v1294
      %v1359 = vpack.c.bf16 %v1295, %v1295
      %v1360 = vpack.c.bf16 %v1296, %v1296
      %v1361 = vpack.c.bf16 %v1297, %v1297
      %v1362 = vpack.c.bf16 %v1298, %v1298
      %v1363 = vpack.c.bf16 %v1299, %v1299
      %v1364 = vpack.c.bf16 %v1300, %v1300
      %v1365 = vpack.c.bf16 %v1301, %v1301
      %v1366 = vpack.c.bf16 %v1302, %v1302
      %v1367 = vpack.c.bf16 %v1303, %v1303
      %v1368 = vpack.c.bf16 %v1304, %v1304
      %v1369 = vpack.c.bf16 %v1305, %v1305
      %v1370 = vpack.c.bf16 %v1306, %v1306
      %v1371 = vpack.c.bf16 %v1307, %v1307
      %v1372 = vpack.c.bf16 %v1308, %v1308
      %v1373 = vpack.c.bf16 %v1309, %v1309
      %v1374 = vpack.c.bf16 %v1310, %v1310
      %v1375 = vpack.c.bf16 %v1311, %v1311
      %v1376 = vpack.c.bf16 %v1312, %v1312
      %v1377 = vpack.c.bf16 %v1313, %v1313
      %v1378 = vpack.c.bf16 %v1314, %v1314
      %v1379 = vpack.c.bf16 %v1315, %v1315
      %v1380 = vpack.c.bf16 %v1316, %v1316
      %v1381 = vpack.c.bf16 %v1317, %v1317
      %v1382 = vpack.c.bf16 %v1318, %v1318
      %v1383 = vpack.c.bf16 %v1319, %v1319
      %v1384 = vpack.c.bf16 %v1320, %v1320
      %v1385 = vpack.c.bf16 %v1321, %v1321
      %v1386 = vpack.c.bf16 %v1322, %v1322
      %v1387 = vpack.c.bf16 %v1323, %v1323
      %v1388 = vpack.c.bf16 %v1324, %v1324
      %v1389 = vpack.c.bf16 %v1325, %v1325
      %v1390 = vpack.c.bf16 %v1326, %v1326
      %v1391 = vpack.c.bf16 %v1327, %v1327
      %v1392 = vpack.c.bf16 %v1328, %v1328
      %v1393 = vpack.c.bf16 %v1329, %v1329
      %v1394 = vpack.c.bf16 %v1330, %v1330
      %v1395 = vpack.c.bf16 %v1331, %v1331
      %v1396 = vpack.c.bf16 %v1332, %v1332
      %v1397 = vpack.c.bf16 %v1333, %v1333
      %v1398 = vpack.c.bf16 %v1334, %v1334
      %v1399 = vpack.c.bf16 %v1335, %v1335
      %v1400 = vpack.c.bf16 %v1336, %v1336
      %v1401 = vpack.c.bf16 %v1337, %v1337
      %v1402 = vpack.c.bf16 %v1338, %v1338
      %v1403 = vpack.c.bf16 %v1339, %v1339
      %vm1404 = vcmask 519168
      %1405 = vst.msk [vmem:[%s267] sm:$0xf] %vm1404, %v1340
      %1406 = vst.msk [vmem:[%s267 + $0x4] sm:$0xf] %vm1404, %v1341
      %1407 = vst.msk [vmem:[%s267 + $0x8] sm:$0xf] %vm1404, %v1342
      %1408 = vst.msk [vmem:[%s267 + $0xc] sm:$0xf] %vm1404, %v1343
      %1409 = vst.msk [vmem:[%s267 + $0x10] sm:$0xf] %vm1404, %v1344
      %1410 = vst.msk [vmem:[%s267 + $0x14] sm:$0xf] %vm1404, %v1345
      %1411 = vst.msk [vmem:[%s267 + $0x18] sm:$0xf] %vm1404, %v1346
      %1412 = vst.msk [vmem:[%s267 + $0x1c] sm:$0xf] %vm1404, %v1347
      %1413 = vst.msk [vmem:[%s267 + $0x20] sm:$0xf] %vm1404, %v1348
      %1414 = vst.msk [vmem:[%s267 + $0x24] sm:$0xf] %vm1404, %v1349
      %1415 = vst.msk [vmem:[%s267 + $0x28] sm:$0xf] %vm1404, %v1350
      %1416 = vst.msk [vmem:[%s267 + $0x2c] sm:$0xf] %vm1404, %v1351
      %1417 = vst.msk [vmem:[%s267 + $0x30] sm:$0xf] %vm1404, %v1352
      %1418 = vst.msk [vmem:[%s267 + $0x34] sm:$0xf] %vm1404, %v1353
      %1419 = vst.msk [vmem:[%s267 + $0x38] sm:$0xf] %vm1404, %v1354
      %1420 = vst.msk [vmem:[%s267 + $0x3c] sm:$0xf] %vm1404, %v1355
      %1421 = vst.msk [vmem:[%s267 + $0x40] sm:$0xf] %vm1404, %v1356
      %1422 = vst.msk [vmem:[%s267 + $0x44] sm:$0xf] %vm1404, %v1357
      %1423 = vst.msk [vmem:[%s267 + $0x48] sm:$0xf] %vm1404, %v1358
      %1424 = vst.msk [vmem:[%s267 + $0x4c] sm:$0xf] %vm1404, %v1359
      %1425 = vst.msk [vmem:[%s267 + $0x50] sm:$0xf] %vm1404, %v1360
      %1426 = vst.msk [vmem:[%s267 + $0x54] sm:$0xf] %vm1404, %v1361
      %1427 = vst.msk [vmem:[%s267 + $0x58] sm:$0xf] %vm1404, %v1362
      %1428 = vst.msk [vmem:[%s267 + $0x5c] sm:$0xf] %vm1404, %v1363
      %1429 = vst.msk [vmem:[%s267 + $0x60] sm:$0xf] %vm1404, %v1364
      %1430 = vst.msk [vmem:[%s267 + $0x64] sm:$0xf] %vm1404, %v1365
      %1431 = vst.msk [vmem:[%s267 + $0x68] sm:$0xf] %vm1404, %v1366
      %1432 = vst.msk [vmem:[%s267 + $0x6c] sm:$0xf] %vm1404, %v1367
      %1433 = vst.msk [vmem:[%s267 + $0x70] sm:$0xf] %vm1404, %v1368
      %1434 = vst.msk [vmem:[%s267 + $0x74] sm:$0xf] %vm1404, %v1369
      %1435 = vst.msk [vmem:[%s267 + $0x78] sm:$0xf] %vm1404, %v1370
      %1436 = vst.msk [vmem:[%s267 + $0x7c] sm:$0xf] %vm1404, %v1371
      %1437 = vst.msk [vmem:[%s267 + $0x80] sm:$0xf] %vm1404, %v1372
      %1438 = vst.msk [vmem:[%s267 + $0x84] sm:$0xf] %vm1404, %v1373
      %1439 = vst.msk [vmem:[%s267 + $0x88] sm:$0xf] %vm1404, %v1374
      %1440 = vst.msk [vmem:[%s267 + $0x8c] sm:$0xf] %vm1404, %v1375
      %1441 = vst.msk [vmem:[%s267 + $0x90] sm:$0xf] %vm1404, %v1376
      %1442 = vst.msk [vmem:[%s267 + $0x94] sm:$0xf] %vm1404, %v1377
      %1443 = vst.msk [vmem:[%s267 + $0x98] sm:$0xf] %vm1404, %v1378
      %1444 = vst.msk [vmem:[%s267 + $0x9c] sm:$0xf] %vm1404, %v1379
      %1445 = vst.msk [vmem:[%s267 + $0xa0] sm:$0xf] %vm1404, %v1380
      %1446 = vst.msk [vmem:[%s267 + $0xa4] sm:$0xf] %vm1404, %v1381
      %1447 = vst.msk [vmem:[%s267 + $0xa8] sm:$0xf] %vm1404, %v1382
      %1448 = vst.msk [vmem:[%s267 + $0xac] sm:$0xf] %vm1404, %v1383
      %1449 = vst.msk [vmem:[%s267 + $0xb0] sm:$0xf] %vm1404, %v1384
      %1450 = vst.msk [vmem:[%s267 + $0xb4] sm:$0xf] %vm1404, %v1385
      %1451 = vst.msk [vmem:[%s267 + $0xb8] sm:$0xf] %vm1404, %v1386
      %1452 = vst.msk [vmem:[%s267 + $0xbc] sm:$0xf] %vm1404, %v1387
      %1453 = vst.msk [vmem:[%s267 + $0xc0] sm:$0xf] %vm1404, %v1388
      %1454 = vst.msk [vmem:[%s267 + $0xc4] sm:$0xf] %vm1404, %v1389
      %1455 = vst.msk [vmem:[%s267 + $0xc8] sm:$0xf] %vm1404, %v1390
      %1456 = vst.msk [vmem:[%s267 + $0xcc] sm:$0xf] %vm1404, %v1391
      %1457 = vst.msk [vmem:[%s267 + $0xd0] sm:$0xf] %vm1404, %v1392
      %1458 = vst.msk [vmem:[%s267 + $0xd4] sm:$0xf] %vm1404, %v1393
      %1459 = vst.msk [vmem:[%s267 + $0xd8] sm:$0xf] %vm1404, %v1394
      %1460 = vst.msk [vmem:[%s267 + $0xdc] sm:$0xf] %vm1404, %v1395
      %1461 = vst.msk [vmem:[%s267 + $0xe0] sm:$0xf] %vm1404, %v1396
      %1462 = vst.msk [vmem:[%s267 + $0xe4] sm:$0xf] %vm1404, %v1397
      %1463 = vst.msk [vmem:[%s267 + $0xe8] sm:$0xf] %vm1404, %v1398
      %1464 = vst.msk [vmem:[%s267 + $0xec] sm:$0xf] %vm1404, %v1399
      %1465 = vst.msk [vmem:[%s267 + $0xf0] sm:$0xf] %vm1404, %v1400
      %1466 = vst.msk [vmem:[%s267 + $0xf4] sm:$0xf] %vm1404, %v1401
      %1467 = vst.msk [vmem:[%s267 + $0xf8] sm:$0xf] %vm1404, %v1402
      %1468 = vst.msk [vmem:[%s267 + $0xfc] sm:$0xf] %vm1404, %v1403
      %s1469 = smul.u32 64, %s19
      %p1470 = scmp.lt.s32.totalorder %s1469, 255
      %s1471 = scalar_select %p1470, %s1469, 255
      %p1472 = scmp.lt.s32.totalorder %s20, 0
      %s1473 = scalar_select %p1472, %s20, 0
      %s1474 = sadd.s32 %s1473, %s1471
      %s1475 = smul.addr %s1474, 4
      %s1476 = scalar_lea.vmem %s4, %s1475
      // Predicated region
      $region37: #{pallas_matmul_bn.1} parent=35 // pred_check
        %p1477 = pneg %p151
      $region38: #{pallas_matmul_bn.1} parent=35 // pred_check_branch
        %1479 = sbr.rel (%p1477) target = $region40
      $region39: #{pallas_matmul_bn.1} parent=35 // pred_region
        %s1480 = smul.u32 64, %s19
      $region40: #{pallas_matmul_bn.1} parent=35 // pred_fallthru
        _
    $region36: #{pallas_matmul_bn.1} parent=5 // pred_fallthru
      _
    %p1481 = scmp.le.s32.totalorder 2, %s10
    // Predicated region
    $region41: #{pallas_matmul_bn.1} parent=5 // pred_check
      %p1482 = pneg %p1481
    $region42: #{pallas_matmul_bn.1} parent=5 // pred_check_branch
      %1484 = sbr.rel (%p1482) target = $region44
    $region43: #{pallas_matmul_bn.1} parent=5 // pred_region
      %s1485 = ssub.s32 %s10, 2
      // Predicated region
      $region45: #{pallas_matmul_bn.1} parent=43 // pred_check
        %p1486 = pneg %p157
      $region46: #{pallas_matmul_bn.1} parent=43 // pred_check_branch
        %1488 = sbr.rel (%p1486) target = $region48
      $region47: #{pallas_matmul_bn.1} parent=43 // pred_region
        %s1489 = smul.u32 64, %s21
        %p1490 = scmp.lt.s32.totalorder %s1489, 255
        %s1491 = scalar_select %p1490, %s1489, 255
        %p1492 = scmp.lt.s32.totalorder %s22, 0
        %s1493 = scalar_select %p1492, %s22, 0
        %s1494 = sadd.s32 %s1493, %s1491
        %s1495 = smul.addr %s1494, 4
        %s1496 = scalar_lea.vmem %s4, %s1495
      $region48: #{pallas_matmul_bn.1} parent=43 // pred_fallthru
        _
    $region44: #{pallas_matmul_bn.1} parent=5 // pred_fallthru
      _
  $region6: #{pallas_matmul_bn.1} parent=0 // loop_footer
    %s14 = sadd.s32 1, %s10
  $region7: #{pallas_matmul_bn.1} parent=0 // loop_footer_branch
    %9 = sbr.rel target = $region3
  $region8: #{pallas_matmul_bn.1} parent=0 // loop_exit
    _

</llo_original>
